<compile_context>
chip_gen: v5e
topology: v5e:2x2
jax: 0.10.0
libtpu: 0.0.40
codegen_flags: <defaults>
</compile_context>

<pallas_src>
import jax
import jax.numpy as jnp
from jax.experimental import pallas as pl
from jax.experimental.pallas import tpu as pltpu

D_IN, D_H1, D_H2, D_OUT = 768, 768, 128, 6
D_OUT_PAD = 128  # lane-dense padded output width


def _round_up(x, m):
    return (x + m - 1) // m * m


def _tpu_generation():
    """Best-effort TPU generation detection (used only for tile-size tuning)."""
    try:
        kind = jax.devices()[0].device_kind.lower()
    except Exception:
        return "other"
    if "v7" in kind or "tpu7" in kind or "7x" in kind:
        return "v7x"
    if "v6" in kind:
        return "v6e"
    if "v5" in kind:
        return "v5e"
    return "other"


def _choose_tb(B, gen):
    """Pick the batch tile: big enough to amortize per-step overhead, never
    over-padding tiny batches, multiple of 16 (f32 & bf16 sublane tiling),
    and >= 2 grid steps on v7x so both TensorCores get work."""
    b_up = _round_up(max(B, 1), 16)
    if gen == "v7x":
        tb_max = 1024          # 64 MiB VMEM -> keep tiles moderate
    elif gen == "v6e":
        tb_max = 2048          # ~0.35us/step overhead -> big tiles win
    else:                      # v5e / unknown
        tb_max = 1024
    tb = min(tb_max, b_up)
    if gen == "v7x" and b_up >= 512:
        # Ensure the "parallel" batch axis has >= 2 steps (2 TCs per chip).
        tb = min(tb, max(256, _round_up(pl.cdiv(b_up, 2), 256)))
    return tb


def mlp_kernel(x_ref, w1_ref, b1_ref, w2_ref, b2_ref, w3_ref, b3_ref, o_ref):
    # Entire fused 3-layer MLP runs on one batch tile resident in VMEM.
    # Matmul operands bf16 (MXU peak), f32 accumulation; bias+ReLU in f32
    # (v5e VPU/EUP have no bf16 support, and this path is not VALU-bound).
    x = x_ref[...].astype(jnp.bfloat16)                                 # in-kernel cast (near-free VPU op)

    h1 = jnp.dot(x, w1_ref[...], preferred_element_type=jnp.float32)   # (tb, 768) f32
    h1 = jnp.maximum(h1 + b1_ref[...], 0.0)

    h2 = jnp.dot(h1.astype(jnp.bfloat16), w2_ref[...],
                 preferred_element_type=jnp.float32)                   # (tb, 128) f32
    h2 = jnp.maximum(h2 + b2_ref[...], 0.0)

    h3 = jnp.dot(h2.astype(jnp.bfloat16), w3_ref[...],
                 preferred_element_type=jnp.float32)                   # (tb, 128) f32
    o_ref[...] = jnp.maximum(h3 + b3_ref[...], 0.0).astype(o_ref.dtype)  # bf16 store


def mlp_forward(x, params, *, tb=None):
    """x: (B, 768) float32. Returns squeeze(relu(mlp(x))) like the torch module."""
    w1, b1, w2, b2, w3, b3 = params
    B = x.shape[0]
    gen = _tpu_generation()
    if tb is None:
        tb = _choose_tb(B, gen)
    grid = pl.cdiv(B, tb)   # trailing partial block is masked by Pallas (no jnp.pad)

    # Zero-pad the final layer to 128 output lanes (unmasked lane-dense stores);
    # the extra lanes stay zero and are sliced off below.
    w3p = jnp.zeros((D_H2, D_OUT_PAD), w3.dtype).at[:, :D_OUT].set(w3)
    b3p = jnp.zeros((1, D_OUT_PAD), b3.dtype).at[:, :D_OUT].set(b3)

    # bf16 matmul weights (tiny, ~1.2 MiB total); x stays f32, cast in-kernel.
    w1b = w1.astype(jnp.bfloat16)
    w2b = w2.astype(jnp.bfloat16)
    w3b = w3p.astype(jnp.bfloat16)

    flops = 2 * grid * tb * (D_IN * D_H1 + D_H1 * D_H2 + D_H2 * D_OUT_PAD)
    bytes_accessed = (B * D_IN * 4                      # x (f32 in)
                      + B * D_OUT_PAD * 2               # out (bf16)
                      + (D_IN * D_H1 + D_H1 * D_H2 + D_H2 * D_OUT_PAD) * 2  # weights bf16
                      + (D_H1 + D_H2 + D_OUT_PAD) * 4)  # biases f32
    cost = pl.CostEstimate(flops=flops, transcendentals=0,
                           bytes_accessed=bytes_accessed)

    vmem_limit = (48 << 20) if gen == "v7x" else (64 << 20)

    out = pl.pallas_call(
        mlp_kernel,
        out_shape=jax.ShapeDtypeStruct((B, D_OUT_PAD), jnp.bfloat16),
        grid_spec=pltpu.PrefetchScalarGridSpec(
            num_scalar_prefetch=0,
            grid=(grid,),
            in_specs=[
                pl.BlockSpec((tb, D_IN), lambda i: (i, 0)),           # x tile (f32)
                # Weights/biases: constant block index -> fetched once, resident.
                pl.BlockSpec((D_IN, D_H1), lambda i: (0, 0)),         # W1 (bf16)
                pl.BlockSpec((1, D_H1), lambda i: (0, 0)),            # b1 (f32)
                pl.BlockSpec((D_H1, D_H2), lambda i: (0, 0)),         # W2 (bf16)
                pl.BlockSpec((1, D_H2), lambda i: (0, 0)),            # b2 (f32)
                pl.BlockSpec((D_H2, D_OUT_PAD), lambda i: (0, 0)),    # W3 padded (bf16)
                pl.BlockSpec((1, D_OUT_PAD), lambda i: (0, 0)),       # b3 padded (f32)
            ],
            out_specs=pl.BlockSpec((tb, D_OUT_PAD), lambda i: (i, 0)),
        ),
        compiler_params=pltpu.CompilerParams(
            dimension_semantics=("parallel",),
            vmem_limit_bytes=vmem_limit),
        cost_estimate=cost,
    )(x, w1b, b1, w2b, b2, w3b, b3p)

    # Slice off the padded lanes; return f32 to match the torch module's dtype.
    out = out[:, :D_OUT].astype(jnp.float32)
    # torch.squeeze removes all size-1 dims (no-op for B>1, OUT=6)
    return jnp.squeeze(out)


def init_params(key):
    """Deterministic init mimicking nn.Linear default (uniform ±1/sqrt(fan_in))."""
    ks = jax.random.split(key, 6)

    def lin(kw, kb, fan_in, fan_out):
        bound = 1.0 / jnp.sqrt(fan_in)
        w = jax.random.uniform(kw, (fan_in, fan_out), jnp.float32, -bound, bound)
        b = jax.random.uniform(kb, (1, fan_out), jnp.float32, -bound, bound)
        return w, b

    w1, b1 = lin(ks[0], ks[1], D_IN, D_H1)
    w2, b2 = lin(ks[2], ks[3], D_H1, D_H2)
    w3, b3 = lin(ks[4], ks[5], D_H2, D_OUT)
    return (w1, b1, w2, b2, w3, b3)


def mlp_reference(x, params):
    """Pure-JAX f32 reference of the torch module."""
    w1, b1, w2, b2, w3, b3 = params
    h = jnp.maximum(x @ w1 + b1, 0.0)
    h = jnp.maximum(h @ w2 + b2, 0.0)
    h = jnp.maximum(h @ w3 + b3, 0.0)
    return jnp.squeeze(h)


if __name__ == "__main__":
    key = jax.random.PRNGKey(0)
    k_x, k_p = jax.random.split(key)
    params = init_params(k_p)

    # Small smoke-test batch (consistent with the module's (B, 768) input).
    B = 8
    x = jax.random.normal(k_x, (B, D_IN), dtype=jnp.float32)

    out = mlp_forward(x, params)
    out = jax.block_until_ready(out)
    ref = mlp_reference(x, params)
    assert out.shape == (B, D_OUT), out.shape
    # bf16 matmul operands + bf16 store -> loosened tolerance vs the f32 reference.
    assert jnp.allclose(out, ref, atol=2e-2, rtol=2e-2), "mismatch vs reference (B=8)"

    # Second check: non-multiple batch to exercise the masked trailing-block path.
    B2 = 300
    x2 = jax.random.normal(jax.random.PRNGKey(1), (B2, D_IN), dtype=jnp.float32)
    out2 = jax.block_until_ready(mlp_forward(x2, params))
    ref2 = mlp_reference(x2, params)
    assert out2.shape == (B2, D_OUT), out2.shape
    assert jnp.allclose(out2, ref2, atol=2e-2, rtol=2e-2), "mismatch vs reference (B=300)"

    print("KERNEL_OK")
</pallas_src>

<mosaic_0001>
module attributes {stable_mosaic.version = 11 : i64} {
  func.func @mlp_kernel(%arg0: i32, %arg1: memref<16x768xf32, #tpu.memory_space<vmem>>, %arg2: memref<768x768xbf16, #tpu.memory_space<vmem>>, %arg3: memref<1x768xf32, #tpu.memory_space<vmem>>, %arg4: memref<768x128xbf16, #tpu.memory_space<vmem>>, %arg5: memref<1x128xf32, #tpu.memory_space<vmem>>, %arg6: memref<128x128xbf16, #tpu.memory_space<vmem>>, %arg7: memref<1x128xf32, #tpu.memory_space<vmem>>, %arg8: memref<16x128xbf16, #tpu.memory_space<vmem>>) attributes {dimension_semantics = [#tpu.dimension_semantics<parallel>], iteration_bounds = array<i64: 1>, scalar_prefetch = 0 : i64, scratch_operands = 0 : i64, tpu.core_type = #tpu.core_type<tc>, window_params = [{transform_indices = @transform_0, window_bounds = array<i64: 16, 768>}, {pipeline_mode = #tpu.pipeline_mode<synchronous>, transform_indices = @transform_1, window_bounds = array<i64: 768, 768>}, {pipeline_mode = #tpu.pipeline_mode<synchronous>, transform_indices = @transform_2, window_bounds = array<i64: 1, 768>}, {pipeline_mode = #tpu.pipeline_mode<synchronous>, transform_indices = @transform_3, window_bounds = array<i64: 768, 128>}, {pipeline_mode = #tpu.pipeline_mode<synchronous>, transform_indices = @transform_4, window_bounds = array<i64: 1, 128>}, {pipeline_mode = #tpu.pipeline_mode<synchronous>, transform_indices = @transform_5, window_bounds = array<i64: 128, 128>}, {pipeline_mode = #tpu.pipeline_mode<synchronous>, transform_indices = @transform_6, window_bounds = array<i64: 1, 128>}, {transform_indices = @transform_7, window_bounds = array<i64: 16, 128>}]} {
    %c0 = arith.constant 0 : index
    %c0_0 = arith.constant 0 : index
    %0 = vector.load %arg1[%c0, %c0_0] : memref<16x768xf32, #tpu.memory_space<vmem>>, vector<16x768xf32>
    %1 = arith.truncf %0 : vector<16x768xf32> to vector<16x768xbf16>
    %c0_1 = arith.constant 0 : index
    %c0_2 = arith.constant 0 : index
    %2 = vector.load %arg2[%c0_1, %c0_2] : memref<768x768xbf16, #tpu.memory_space<vmem>>, vector<768x768xbf16>
    %cst = arith.constant dense<0.000000e+00> : vector<16x768xf32>
    %3 = tpu.matmul %1, %2, %cst {dimension_numbers = #tpu.dot_dimension_numbers<[1], [0], [0], [1], [0, 0, 1, 1], [], []>} : vector<16x768xbf16>, vector<768x768xbf16>, vector<16x768xf32> -> vector<16x768xf32>
    %c0_3 = arith.constant 0 : index
    %c0_4 = arith.constant 0 : index
    %4 = vector.load %arg3[%c0_3, %c0_4] : memref<1x768xf32, #tpu.memory_space<vmem>>, vector<1x768xf32>
    %5 = vector.broadcast %4 : vector<1x768xf32> to vector<16x768xf32>
    %6 = arith.addf %3, %5 : vector<16x768xf32>
    %cst_5 = arith.constant 0.000000e+00 : f32
    %7 = vector.broadcast %cst_5 : f32 to vector<16x768xf32>
    %8 = arith.maximumf %6, %7 : vector<16x768xf32>
    %9 = arith.truncf %8 : vector<16x768xf32> to vector<16x768xbf16>
    %c0_6 = arith.constant 0 : index
    %c0_7 = arith.constant 0 : index
    %10 = vector.load %arg4[%c0_6, %c0_7] : memref<768x128xbf16, #tpu.memory_space<vmem>>, vector<768x128xbf16>
    %cst_8 = arith.constant dense<0.000000e+00> : vector<16x128xf32>
    %11 = tpu.matmul %9, %10, %cst_8 {dimension_numbers = #tpu.dot_dimension_numbers<[1], [0], [0], [1], [0, 0, 1, 1], [], []>} : vector<16x768xbf16>, vector<768x128xbf16>, vector<16x128xf32> -> vector<16x128xf32>
    %c0_9 = arith.constant 0 : index
    %c0_10 = arith.constant 0 : index
    %12 = vector.load %arg5[%c0_9, %c0_10] : memref<1x128xf32, #tpu.memory_space<vmem>>, vector<1x128xf32>
    %13 = vector.broadcast %12 : vector<1x128xf32> to vector<16x128xf32>
    %14 = arith.addf %11, %13 : vector<16x128xf32>
    %cst_11 = arith.constant 0.000000e+00 : f32
    %15 = vector.broadcast %cst_11 : f32 to vector<16x128xf32>
    %16 = arith.maximumf %14, %15 : vector<16x128xf32>
    %17 = arith.truncf %16 : vector<16x128xf32> to vector<16x128xbf16>
    %c0_12 = arith.constant 0 : index
    %c0_13 = arith.constant 0 : index
    %18 = vector.load %arg6[%c0_12, %c0_13] : memref<128x128xbf16, #tpu.memory_space<vmem>>, vector<128x128xbf16>
    %cst_14 = arith.constant dense<0.000000e+00> : vector<16x128xf32>
    %19 = tpu.matmul %17, %18, %cst_14 {dimension_numbers = #tpu.dot_dimension_numbers<[1], [0], [0], [1], [0, 0, 1, 1], [], []>} : vector<16x128xbf16>, vector<128x128xbf16>, vector<16x128xf32> -> vector<16x128xf32>
    %c0_15 = arith.constant 0 : index
    %c0_16 = arith.constant 0 : index
    %20 = vector.load %arg7[%c0_15, %c0_16] : memref<1x128xf32, #tpu.memory_space<vmem>>, vector<1x128xf32>
    %21 = vector.broadcast %20 : vector<1x128xf32> to vector<16x128xf32>
    %22 = arith.addf %19, %21 : vector<16x128xf32>
    %cst_17 = arith.constant 0.000000e+00 : f32
    %23 = vector.broadcast %cst_17 : f32 to vector<16x128xf32>
    %24 = arith.maximumf %22, %23 : vector<16x128xf32>
    %25 = arith.truncf %24 : vector<16x128xf32> to vector<16x128xbf16>
    %c0_18 = arith.constant 0 : index
    %c0_19 = arith.constant 0 : index
    %26 = vector.load %arg8[%c0_18, %c0_19] : memref<16x128xbf16, #tpu.memory_space<vmem>>, vector<16x128xbf16>
    tpu.vector_store %arg8[%c0_18, %c0_19], %25 {strides = array<i32>} : memref<16x128xbf16, #tpu.memory_space<vmem>>, vector<16x128xbf16>,
    return
  }
  func.func @transform_0(%arg0: i32) -> (i32, i32) {
    %c0_i32 = arith.constant 0 : i32
    %c0_i32_0 = arith.constant 0 : i32
    return %arg0, %c0_i32 : i32, i32
  }
  func.func @transform_1(%arg0: i32) -> (i32, i32) {
    %c0_i32 = arith.constant 0 : i32
    %c0_i32_0 = arith.constant 0 : i32
    %c0_i32_1 = arith.constant 0 : i32
    return %c0_i32, %c0_i32_0 : i32, i32
  }
  func.func @transform_2(%arg0: i32) -> (i32, i32) {
    %c0_i32 = arith.constant 0 : i32
    %c0_i32_0 = arith.constant 0 : i32
    %c0_i32_1 = arith.constant 0 : i32
    return %c0_i32, %c0_i32_0 : i32, i32
  }
  func.func @transform_3(%arg0: i32) -> (i32, i32) {
    %c0_i32 = arith.constant 0 : i32
    %c0_i32_0 = arith.constant 0 : i32
    %c0_i32_1 = arith.constant 0 : i32
    return %c0_i32, %c0_i32_0 : i32, i32
  }
  func.func @transform_4(%arg0: i32) -> (i32, i32) {
    %c0_i32 = arith.constant 0 : i32
    %c0_i32_0 = arith.constant 0 : i32
    %c0_i32_1 = arith.constant 0 : i32
    return %c0_i32, %c0_i32_0 : i32, i32
  }
  func.func @transform_5(%arg0: i32) -> (i32, i32) {
    %c0_i32 = arith.constant 0 : i32
    %c0_i32_0 = arith.constant 0 : i32
    %c0_i32_1 = arith.constant 0 : i32
    return %c0_i32, %c0_i32_0 : i32, i32
  }
  func.func @transform_6(%arg0: i32) -> (i32, i32) {
    %c0_i32 = arith.constant 0 : i32
    %c0_i32_0 = arith.constant 0 : i32
    %c0_i32_1 = arith.constant 0 : i32
    return %c0_i32, %c0_i32_0 : i32, i32
  }
  func.func @transform_7(%arg0: i32) -> (i32, i32) {
    %c0_i32 = arith.constant 0 : i32
    %c0_i32_0 = arith.constant 0 : i32
    return %arg0, %c0_i32 : i32, i32
  }
}

</mosaic_0001>

<llo_original>
// kernel: tpu_custom_call.1
$region0: #{tpu_custom_call.1}
  #allocation0 [shape = 'u32[]', space=smem, size = 0x4, offset = 0x4, fixed_abs, tag = 'smem constant byte address 0x4 - core index']
  #allocation1 [shape = 'u32[72,128]{1,0:T(1,128)}', space=vmem, size = 0x9000, scoped, tag = 'internal scratch']
  %s0 = inlined_call_operand.hbm [shape: f32[8,768], index: 0, kind: input, shape index: {}]
  %s1 = inlined_call_operand.hbm [shape: bf16[768,768], index: 1, kind: input, shape index: {}]
  %s2 = inlined_call_operand.hbm [shape: f32[1,768], index: 2, kind: input, shape index: {}]
  %s3 = inlined_call_operand.hbm [shape: bf16[768,128], index: 3, kind: input, shape index: {}]
  %s4 = inlined_call_operand.hbm [shape: f32[1,128], index: 4, kind: input, shape index: {}]
  %s5 = inlined_call_operand.hbm [shape: bf16[128,128], index: 5, kind: input, shape index: {}]
  %s6 = inlined_call_operand.hbm [shape: f32[1,128], index: 6, kind: input, shape index: {}]
  %s7 = inlined_call_operand.hbm [shape: bf16[8,128], index: 7, kind: output, shape index: {}]
  %s8 = sld [smem:[#allocation0]]
  $region66: #{tpu_custom_call.1} parent=0
    _
  %s10 = ssub.s32 1, %s8
  %s11 = scalar_select 0, %s10, %s8
  $region1: #{tpu_custom_call.1} parent=0
    #allocation2 [shape = 'u8[49152]{0}', space=vmem, size = 0xc000, scoped, tag = 'input window, operand 0, single buffered']
    #allocation3 [shape = 's32[1]{0}', space=sflag, size = 0x4, scoped, tag = 'scoped memory for tpu_custom_call.1']
    #allocation4 [shape = 's32[1]{0}', space=sflag, size = 0x4, scoped, tag = 'scoped memory for tpu_custom_call.1']
    #allocation5 [shape = 'u8[1179648]{0}', space=vmem, size = 0x120000, scoped, tag = 'input window, operand 1, single buffered']
    #allocation6 [shape = 's32[1]{0}', space=sflag, size = 0x4, scoped, tag = 'scoped memory for tpu_custom_call.1']
    #allocation7 [shape = 'u8[3072]{0}', space=vmem, size = 0xc00, scoped, tag = 'input window, operand 2, single buffered']
    #allocation8 [shape = 'u8[196608]{0}', space=vmem, size = 0x30000, scoped, tag = 'input window, operand 3, single buffered']
    #allocation9 [shape = 's32[1]{0}', space=sflag, size = 0x4, scoped, tag = 'scoped memory for tpu_custom_call.1']
    #allocation10 [shape = 'u8[512]{0}', space=vmem, size = 0x400, scoped, tag = 'input window, operand 4, single buffered']
    #allocation11 [shape = 'u8[32768]{0}', space=vmem, size = 0x8000, scoped, tag = 'input window, operand 5, single buffered']
    #allocation12 [shape = 's32[1]{0}', space=sflag, size = 0x4, scoped, tag = 'scoped memory for tpu_custom_call.1']
    #allocation13 [shape = 'u8[512]{0}', space=vmem, size = 0x400, scoped, tag = 'input window, operand 6, single buffered']
    #allocation14 [shape = 'u8[4096]{0}', space=vmem, size = 0x1000, scoped, tag = 'output window, operand 0, single buffered']
    %12 = vsyncpa [#allocation3], 0
    %13 = vsyncpa [#allocation6], 0
    %14 = vsyncpa [#allocation9], 0
    %15 = vsyncpa [#allocation12], 0
    %16 = vsyncpa [#allocation4], 0
    // Predicated region
    $region2: #{tpu_custom_call.1} parent=1 // pred_check
      _
    $region3: #{tpu_custom_call.1} parent=1 // pred_check_branch
      %18 = sbr.rel (0) target = $region5
    $region4: #{tpu_custom_call.1} parent=1 // pred_region
      %20 = vsyncadd [#allocation3], 768
      %s21 = sshll.u32 %s0, 4
      %s22 = int_to_ptr.hbm [resolvable:$true] %s21
      %s23 = sshll.u32 [#allocation2], 4
      %s24 = int_to_ptr.vmem [resolvable:$true] %s23
      %29 = dma.hbm_to_vmem [thread:$0]  %s22, 768, %s24, [#allocation3], 768, 768, 48
    $region5: #{tpu_custom_call.1} parent=1 // pred_fallthru
      _
    // Predicated region
    $region6: #{tpu_custom_call.1} parent=1 // pred_check
      _
    $region7: #{tpu_custom_call.1} parent=1 // pred_check_branch
      %31 = sbr.rel (0) target = $region9
    $region8: #{tpu_custom_call.1} parent=1 // pred_region
      %33 = vsyncadd [#allocation6], 0
      %s34 = sshll.u32 %s1, 4
      %s35 = int_to_ptr.hbm [resolvable:$true] %s34
      %s36 = sshll.u32 [#allocation5], 4
      %s37 = int_to_ptr.vmem [resolvable:$true] %s36
      %42 = dma.hbm_to_vmem [thread:$0]  %s35, 36864, %s37, [#allocation6], 384, 384, 24
    $region9: #{tpu_custom_call.1} parent=1 // pred_fallthru
      _
    // Predicated region
    $region10: #{tpu_custom_call.1} parent=1 // pred_check
      _
    $region11: #{tpu_custom_call.1} parent=1 // pred_check_branch
      %44 = sbr.rel (0) target = $region13
    $region12: #{tpu_custom_call.1} parent=1 // pred_region
      %46 = vsyncadd [#allocation6], 0
      %s48 = sshll.u32 %s2, 4
      %s49 = int_to_ptr.hbm [resolvable:$true] %s48
      %s50 = sshll.u32 [#allocation7], 4
      %s51 = int_to_ptr.vmem [resolvable:$true] %s50
      %53 = dma.hbm_to_vmem [thread:$0]  %s49, 96, %s51, [#allocation6]
    $region13: #{tpu_custom_call.1} parent=1 // pred_fallthru
      _
    // Predicated region
    $region14: #{tpu_custom_call.1} parent=1 // pred_check
      _
    $region15: #{tpu_custom_call.1} parent=1 // pred_check_branch
      %55 = sbr.rel (0) target = $region17
    $region16: #{tpu_custom_call.1} parent=1 // pred_region
      %57 = vsyncadd [#allocation9], 0
      %s58 = sshll.u32 %s3, 4
      %s59 = int_to_ptr.hbm [resolvable:$true] %s58
      %s60 = sshll.u32 [#allocation8], 4
      %s61 = int_to_ptr.vmem [resolvable:$true] %s60
      %66 = dma.hbm_to_vmem [thread:$0]  %s59, 6144, %s61, [#allocation9], 64, 64, 4
    $region17: #{tpu_custom_call.1} parent=1 // pred_fallthru
      _
    // Predicated region
    $region18: #{tpu_custom_call.1} parent=1 // pred_check
      _
    $region19: #{tpu_custom_call.1} parent=1 // pred_check_branch
      %68 = sbr.rel (0) target = $region21
    $region20: #{tpu_custom_call.1} parent=1 // pred_region
      %70 = vsyncadd [#allocation9], 0
      %s72 = sshll.u32 %s4, 4
      %s73 = int_to_ptr.hbm [resolvable:$true] %s72
      %s74 = sshll.u32 [#allocation10], 4
      %s75 = int_to_ptr.vmem [resolvable:$true] %s74
      %77 = dma.hbm_to_vmem [thread:$0]  %s73, 16, %s75, [#allocation9]
    $region21: #{tpu_custom_call.1} parent=1 // pred_fallthru
      _
    // Predicated region
    $region22: #{tpu_custom_call.1} parent=1 // pred_check
      _
    $region23: #{tpu_custom_call.1} parent=1 // pred_check_branch
      %79 = sbr.rel (0) target = $region25
    $region24: #{tpu_custom_call.1} parent=1 // pred_region
      %81 = vsyncadd [#allocation12], 0
      %s82 = sshll.u32 %s5, 4
      %s83 = int_to_ptr.hbm [resolvable:$true] %s82
      %s84 = sshll.u32 [#allocation11], 4
      %s85 = int_to_ptr.vmem [resolvable:$true] %s84
      %90 = dma.hbm_to_vmem [thread:$0]  %s83, 1024, %s85, [#allocation12], 64, 64, 4
    $region25: #{tpu_custom_call.1} parent=1 // pred_fallthru
      _
    // Predicated region
    $region26: #{tpu_custom_call.1} parent=1 // pred_check
      _
    $region27: #{tpu_custom_call.1} parent=1 // pred_check_branch
      %92 = sbr.rel (0) target = $region29
    $region28: #{tpu_custom_call.1} parent=1 // pred_region
      %94 = vsyncadd [#allocation12], 0
      %s96 = sshll.u32 %s6, 4
      %s97 = int_to_ptr.hbm [resolvable:$true] %s96
      %s98 = sshll.u32 [#allocation13], 4
      %s99 = int_to_ptr.vmem [resolvable:$true] %s98
      %101 = dma.hbm_to_vmem [thread:$0]  %s97, 16, %s99, [#allocation12]
    $region29: #{tpu_custom_call.1} parent=1 // pred_fallthru
      _
    // Predicated region
    $region30: #{tpu_custom_call.1} parent=1 // pred_check
      _
    $region31: #{tpu_custom_call.1} parent=1 // pred_check_branch
      %103 = sbr.rel (0) target = $region33
    $region32: #{tpu_custom_call.1} parent=1 // pred_region
      %105 = dma.done [#allocation3], 1536
    $region33: #{tpu_custom_call.1} parent=1 // pred_fallthru
      _
    // Predicated region
    $region34: #{tpu_custom_call.1} parent=1 // pred_check
      _
    $region35: #{tpu_custom_call.1} parent=1 // pred_check_branch
      %107 = sbr.rel (0) target = $region37
    $region36: #{tpu_custom_call.1} parent=1 // pred_region
      %109 = dma.done [#allocation6], 36864
    $region37: #{tpu_custom_call.1} parent=1 // pred_fallthru
      _
    // Predicated region
    $region38: #{tpu_custom_call.1} parent=1 // pred_check
      _
    $region39: #{tpu_custom_call.1} parent=1 // pred_check_branch
      %111 = sbr.rel (0) target = $region41
    $region40: #{tpu_custom_call.1} parent=1 // pred_region
      %113 = dma.done [#allocation6], 96
    $region41: #{tpu_custom_call.1} parent=1 // pred_fallthru
      _
    // Predicated region
    $region42: #{tpu_custom_call.1} parent=1 // pred_check
      _
    $region43: #{tpu_custom_call.1} parent=1 // pred_check_branch
      %115 = sbr.rel (0) target = $region45
    $region44: #{tpu_custom_call.1} parent=1 // pred_region
      %117 = dma.done [#allocation9], 6144
    $region45: #{tpu_custom_call.1} parent=1 // pred_fallthru
      _
    // Predicated region
    $region46: #{tpu_custom_call.1} parent=1 // pred_check
      _
    $region47: #{tpu_custom_call.1} parent=1 // pred_check_branch
      %119 = sbr.rel (0) target = $region49
    $region48: #{tpu_custom_call.1} parent=1 // pred_region
      %121 = dma.done [#allocation9], 16
    $region49: #{tpu_custom_call.1} parent=1 // pred_fallthru
      _
    // Predicated region
    $region50: #{tpu_custom_call.1} parent=1 // pred_check
      _
    $region51: #{tpu_custom_call.1} parent=1 // pred_check_branch
      %123 = sbr.rel (0) target = $region53
    $region52: #{tpu_custom_call.1} parent=1 // pred_region
      %125 = dma.done [#allocation12], 1024
    $region53: #{tpu_custom_call.1} parent=1 // pred_fallthru
      _
    // Predicated region
    $region54: #{tpu_custom_call.1} parent=1 // pred_check
      _
    $region55: #{tpu_custom_call.1} parent=1 // pred_check_branch
      %127 = sbr.rel (0) target = $region57
    $region56: #{tpu_custom_call.1} parent=1 // pred_region
      %129 = dma.done [#allocation12], 16
    $region57: #{tpu_custom_call.1} parent=1 // pred_fallthru
      _
    %v130 = vld [vmem:[#allocation2] sm:$0xff]
    %v131 = vld [vmem:[#allocation2 + $0x8] sm:$0xff]
    %v132 = vld [vmem:[#allocation2 + $0x10] sm:$0xff]
    %v133 = vld [vmem:[#allocation2 + $0x18] sm:$0xff]
    %v134 = vld [vmem:[#allocation2 + $0x20] sm:$0xff]
    %v135 = vld [vmem:[#allocation2 + $0x28] sm:$0xff]
    %v136 = vld [vmem:[#allocation2 + $0x30] sm:$0xff]
    %v137 = vld [vmem:[#allocation2 + $0x38] sm:$0xff]
    %v138 = vld [vmem:[#allocation2 + $0x40] sm:$0xff]
    %v139 = vld [vmem:[#allocation2 + $0x48] sm:$0xff]
    %v140 = vld [vmem:[#allocation2 + $0x50] sm:$0xff]
    %v141 = vld [vmem:[#allocation2 + $0x58] sm:$0xff]
    %v142 = vpack.c.bf16 %v136, %v130
    %v143 = vpack.c.bf16 %v137, %v131
    %v144 = vpack.c.bf16 %v138, %v132
    %v145 = vpack.c.bf16 %v139, %v133
    %v146 = vpack.c.bf16 %v140, %v134
    %v147 = vpack.c.bf16 %v141, %v135
    %v148 = vld [vmem:[#allocation5] sm:$0xff]
    %v149 = vld [vmem:[#allocation5 + $0x8] sm:$0xff]
    %v150 = vld [vmem:[#allocation5 + $0x10] sm:$0xff]
    %v151 = vld [vmem:[#allocation5 + $0x18] sm:$0xff]
    %v152 = vld [vmem:[#allocation5 + $0x20] sm:$0xff]
    %v153 = vld [vmem:[#allocation5 + $0x28] sm:$0xff]
    %v154 = vld [vmem:[#allocation5 + $0x30] sm:$0xff]
    %v155 = vld [vmem:[#allocation5 + $0x38] sm:$0xff]
    %v156 = vld [vmem:[#allocation5 + $0x40] sm:$0xff]
    %v157 = vld [vmem:[#allocation5 + $0x48] sm:$0xff]
    %v158 = vld [vmem:[#allocation5 + $0x50] sm:$0xff]
    %v159 = vld [vmem:[#allocation5 + $0x58] sm:$0xff]
    %v160 = vld [vmem:[#allocation5 + $0x60] sm:$0xff]
    %v161 = vld [vmem:[#allocation5 + $0x68] sm:$0xff]
    %v162 = vld [vmem:[#allocation5 + $0x70] sm:$0xff]
    %v163 = vld [vmem:[#allocation5 + $0x78] sm:$0xff]
    %v164 = vld [vmem:[#allocation5 + $0x80] sm:$0xff]
    %v165 = vld [vmem:[#allocation5 + $0x88] sm:$0xff]
    %v166 = vld [vmem:[#allocation5 + $0x90] sm:$0xff]
    %v167 = vld [vmem:[#allocation5 + $0x98] sm:$0xff]
    %v168 = vld [vmem:[#allocation5 + $0xa0] sm:$0xff]
    %v169 = vld [vmem:[#allocation5 + $0xa8] sm:$0xff]
    %v170 = vld [vmem:[#allocation5 + $0xb0] sm:$0xff]
    %v171 = vld [vmem:[#allocation5 + $0xb8] sm:$0xff]
    %v172 = vld [vmem:[#allocation5 + $0xc0] sm:$0xff]
    %v173 = vld [vmem:[#allocation5 + $0xc8] sm:$0xff]
    %v174 = vld [vmem:[#allocation5 + $0xd0] sm:$0xff]
    %v175 = vld [vmem:[#allocation5 + $0xd8] sm:$0xff]
    %v176 = vld [vmem:[#allocation5 + $0xe0] sm:$0xff]
    %v177 = vld [vmem:[#allocation5 + $0xe8] sm:$0xff]
    %v178 = vld [vmem:[#allocation5 + $0xf0] sm:$0xff]
    %v179 = vld [vmem:[#allocation5 + $0xf8] sm:$0xff]
    %v180 = vld [vmem:[#allocation5 + $0x100] sm:$0xff]
    %v181 = vld [vmem:[#allocation5 + $0x108] sm:$0xff]
    %v182 = vld [vmem:[#allocation5 + $0x110] sm:$0xff]
    %v183 = vld [vmem:[#allocation5 + $0x118] sm:$0xff]
    %v184 = vld [vmem:[#allocation5 + $0x120] sm:$0xff]
    %v185 = vld [vmem:[#allocation5 + $0x128] sm:$0xff]
    %v186 = vld [vmem:[#allocation5 + $0x130] sm:$0xff]
    %v187 = vld [vmem:[#allocation5 + $0x138] sm:$0xff]
    %v188 = vld [vmem:[#allocation5 + $0x140] sm:$0xff]
    %v189 = vld [vmem:[#allocation5 + $0x148] sm:$0xff]
    %v190 = vld [vmem:[#allocation5 + $0x150] sm:$0xff]
    %v191 = vld [vmem:[#allocation5 + $0x158] sm:$0xff]
    %v192 = vld [vmem:[#allocation5 + $0x160] sm:$0xff]
    %v193 = vld [vmem:[#allocation5 + $0x168] sm:$0xff]
    %v194 = vld [vmem:[#allocation5 + $0x170] sm:$0xff]
    %v195 = vld [vmem:[#allocation5 + $0x178] sm:$0xff]
    %v196 = vld [vmem:[#allocation5 + $0x180] sm:$0xff]
    %v197 = vld [vmem:[#allocation5 + $0x188] sm:$0xff]
    %v198 = vld [vmem:[#allocation5 + $0x190] sm:$0xff]
    %v199 = vld [vmem:[#allocation5 + $0x198] sm:$0xff]
    %v200 = vld [vmem:[#allocation5 + $0x1a0] sm:$0xff]
    %v201 = vld [vmem:[#allocation5 + $0x1a8] sm:$0xff]
    %v202 = vld [vmem:[#allocation5 + $0x1b0] sm:$0xff]
    %v203 = vld [vmem:[#allocation5 + $0x1b8] sm:$0xff]
    %v204 = vld [vmem:[#allocation5 + $0x1c0] sm:$0xff]
    %v205 = vld [vmem:[#allocation5 + $0x1c8] sm:$0xff]
    %v206 = vld [vmem:[#allocation5 + $0x1d0] sm:$0xff]
    %v207 = vld [vmem:[#allocation5 + $0x1d8] sm:$0xff]
    %v208 = vld [vmem:[#allocation5 + $0x1e0] sm:$0xff]
    %v209 = vld [vmem:[#allocation5 + $0x1e8] sm:$0xff]
    %v210 = vld [vmem:[#allocation5 + $0x1f0] sm:$0xff]
    %v211 = vld [vmem:[#allocation5 + $0x1f8] sm:$0xff]
    %v212 = vld [vmem:[#allocation5 + $0x200] sm:$0xff]
    %v213 = vld [vmem:[#allocation5 + $0x208] sm:$0xff]
    %v214 = vld [vmem:[#allocation5 + $0x210] sm:$0xff]
    %v215 = vld [vmem:[#allocation5 + $0x218] sm:$0xff]
    %v216 = vld [vmem:[#allocation5 + $0x220] sm:$0xff]
    %v217 = vld [vmem:[#allocation5 + $0x228] sm:$0xff]
    %v218 = vld [vmem:[#allocation5 + $0x230] sm:$0xff]
    %v219 = vld [vmem:[#allocation5 + $0x238] sm:$0xff]
    %v220 = vld [vmem:[#allocation5 + $0x240] sm:$0xff]
    %v221 = vld [vmem:[#allocation5 + $0x248] sm:$0xff]
    %v222 = vld [vmem:[#allocation5 + $0x250] sm:$0xff]
    %v223 = vld [vmem:[#allocation5 + $0x258] sm:$0xff]
    %v224 = vld [vmem:[#allocation5 + $0x260] sm:$0xff]
    %v225 = vld [vmem:[#allocation5 + $0x268] sm:$0xff]
    %v226 = vld [vmem:[#allocation5 + $0x270] sm:$0xff]
    %v227 = vld [vmem:[#allocation5 + $0x278] sm:$0xff]
    %v228 = vld [vmem:[#allocation5 + $0x280] sm:$0xff]
    %v229 = vld [vmem:[#allocation5 + $0x288] sm:$0xff]
    %v230 = vld [vmem:[#allocation5 + $0x290] sm:$0xff]
    %v231 = vld [vmem:[#allocation5 + $0x298] sm:$0xff]
    %v232 = vld [vmem:[#allocation5 + $0x2a0] sm:$0xff]
    %v233 = vld [vmem:[#allocation5 + $0x2a8] sm:$0xff]
    %v234 = vld [vmem:[#allocation5 + $0x2b0] sm:$0xff]
    %v235 = vld [vmem:[#allocation5 + $0x2b8] sm:$0xff]
    %v236 = vld [vmem:[#allocation5 + $0x2c0] sm:$0xff]
    %v237 = vld [vmem:[#allocation5 + $0x2c8] sm:$0xff]
    %v238 = vld [vmem:[#allocation5 + $0x2d0] sm:$0xff]
    %v239 = vld [vmem:[#allocation5 + $0x2d8] sm:$0xff]
    %v240 = vld [vmem:[#allocation5 + $0x2e0] sm:$0xff]
    %v241 = vld [vmem:[#allocation5 + $0x2e8] sm:$0xff]
    %v242 = vld [vmem:[#allocation5 + $0x2f0] sm:$0xff]
    %v243 = vld [vmem:[#allocation5 + $0x2f8] sm:$0xff]
    %v244 = vld [vmem:[#allocation5 + $0x300] sm:$0xff]
    %v245 = vld [vmem:[#allocation5 + $0x308] sm:$0xff]
    %v246 = vld [vmem:[#allocation5 + $0x310] sm:$0xff]
    %v247 = vld [vmem:[#allocation5 + $0x318] sm:$0xff]
    %v248 = vld [vmem:[#allocation5 + $0x320] sm:$0xff]
    %v249 = vld [vmem:[#allocation5 + $0x328] sm:$0xff]
    %v250 = vld [vmem:[#allocation5 + $0x330] sm:$0xff]
    %v251 = vld [vmem:[#allocation5 + $0x338] sm:$0xff]
    %v252 = vld [vmem:[#allocation5 + $0x340] sm:$0xff]
    %v253 = vld [vmem:[#allocation5 + $0x348] sm:$0xff]
    %v254 = vld [vmem:[#allocation5 + $0x350] sm:$0xff]
    %v255 = vld [vmem:[#allocation5 + $0x358] sm:$0xff]
    %v256 = vld [vmem:[#allocation5 + $0x360] sm:$0xff]
    %v257 = vld [vmem:[#allocation5 + $0x368] sm:$0xff]
    %v258 = vld [vmem:[#allocation5 + $0x370] sm:$0xff]
    %v259 = vld [vmem:[#allocation5 + $0x378] sm:$0xff]
    %v260 = vld [vmem:[#allocation5 + $0x380] sm:$0xff]
    %v261 = vld [vmem:[#allocation5 + $0x388] sm:$0xff]
    %v262 = vld [vmem:[#allocation5 + $0x390] sm:$0xff]
    %v263 = vld [vmem:[#allocation5 + $0x398] sm:$0xff]
    %v264 = vld [vmem:[#allocation5 + $0x3a0] sm:$0xff]
    %v265 = vld [vmem:[#allocation5 + $0x3a8] sm:$0xff]
    %v266 = vld [vmem:[#allocation5 + $0x3b0] sm:$0xff]
    %v267 = vld [vmem:[#allocation5 + $0x3b8] sm:$0xff]
    %v268 = vld [vmem:[#allocation5 + $0x3c0] sm:$0xff]
    %v269 = vld [vmem:[#allocation5 + $0x3c8] sm:$0xff]
    %v270 = vld [vmem:[#allocation5 + $0x3d0] sm:$0xff]
    %v271 = vld [vmem:[#allocation5 + $0x3d8] sm:$0xff]
    %v272 = vld [vmem:[#allocation5 + $0x3e0] sm:$0xff]
    %v273 = vld [vmem:[#allocation5 + $0x3e8] sm:$0xff]
    %v274 = vld [vmem:[#allocation5 + $0x3f0] sm:$0xff]
    %v275 = vld [vmem:[#allocation5 + $0x3f8] sm:$0xff]
    %v276 = vld [vmem:[#allocation5 + $0x400] sm:$0xff]
    %v277 = vld [vmem:[#allocation5 + $0x408] sm:$0xff]
    %v278 = vld [vmem:[#allocation5 + $0x410] sm:$0xff]
    %v279 = vld [vmem:[#allocation5 + $0x418] sm:$0xff]
    %v280 = vld [vmem:[#allocation5 + $0x420] sm:$0xff]
    %v281 = vld [vmem:[#allocation5 + $0x428] sm:$0xff]
    %v282 = vld [vmem:[#allocation5 + $0x430] sm:$0xff]
    %v283 = vld [vmem:[#allocation5 + $0x438] sm:$0xff]
    %v284 = vld [vmem:[#allocation5 + $0x440] sm:$0xff]
    %v285 = vld [vmem:[#allocation5 + $0x448] sm:$0xff]
    %v286 = vld [vmem:[#allocation5 + $0x450] sm:$0xff]
    %v287 = vld [vmem:[#allocation5 + $0x458] sm:$0xff]
    %v288 = vld [vmem:[#allocation5 + $0x460] sm:$0xff]
    %v289 = vld [vmem:[#allocation5 + $0x468] sm:$0xff]
    %v290 = vld [vmem:[#allocation5 + $0x470] sm:$0xff]
    %v291 = vld [vmem:[#allocation5 + $0x478] sm:$0xff]
    %v292 = vld [vmem:[#allocation5 + $0x480] sm:$0xff]
    %v293 = vld [vmem:[#allocation5 + $0x488] sm:$0xff]
    %v294 = vld [vmem:[#allocation5 + $0x490] sm:$0xff]
    %v295 = vld [vmem:[#allocation5 + $0x498] sm:$0xff]
    %v296 = vld [vmem:[#allocation5 + $0x4a0] sm:$0xff]
    %v297 = vld [vmem:[#allocation5 + $0x4a8] sm:$0xff]
    %v298 = vld [vmem:[#allocation5 + $0x4b0] sm:$0xff]
    %v299 = vld [vmem:[#allocation5 + $0x4b8] sm:$0xff]
    %v300 = vld [vmem:[#allocation5 + $0x4c0] sm:$0xff]
    %v301 = vld [vmem:[#allocation5 + $0x4c8] sm:$0xff]
    %v302 = vld [vmem:[#allocation5 + $0x4d0] sm:$0xff]
    %v303 = vld [vmem:[#allocation5 + $0x4d8] sm:$0xff]
    %v304 = vld [vmem:[#allocation5 + $0x4e0] sm:$0xff]
    %v305 = vld [vmem:[#allocation5 + $0x4e8] sm:$0xff]
    %v306 = vld [vmem:[#allocation5 + $0x4f0] sm:$0xff]
    %v307 = vld [vmem:[#allocation5 + $0x4f8] sm:$0xff]
    %v308 = vld [vmem:[#allocation5 + $0x500] sm:$0xff]
    %v309 = vld [vmem:[#allocation5 + $0x508] sm:$0xff]
    %v310 = vld [vmem:[#allocation5 + $0x510] sm:$0xff]
    %v311 = vld [vmem:[#allocation5 + $0x518] sm:$0xff]
    %v312 = vld [vmem:[#allocation5 + $0x520] sm:$0xff]
    %v313 = vld [vmem:[#allocation5 + $0x528] sm:$0xff]
    %v314 = vld [vmem:[#allocation5 + $0x530] sm:$0xff]
    %v315 = vld [vmem:[#allocation5 + $0x538] sm:$0xff]
    %v316 = vld [vmem:[#allocation5 + $0x540] sm:$0xff]
    %v317 = vld [vmem:[#allocation5 + $0x548] sm:$0xff]
    %v318 = vld [vmem:[#allocation5 + $0x550] sm:$0xff]
    %v319 = vld [vmem:[#allocation5 + $0x558] sm:$0xff]
    %v320 = vld [vmem:[#allocation5 + $0x560] sm:$0xff]
    %v321 = vld [vmem:[#allocation5 + $0x568] sm:$0xff]
    %v322 = vld [vmem:[#allocation5 + $0x570] sm:$0xff]
    %v323 = vld [vmem:[#allocation5 + $0x578] sm:$0xff]
    %v324 = vld [vmem:[#allocation5 + $0x580] sm:$0xff]
    %v325 = vld [vmem:[#allocation5 + $0x588] sm:$0xff]
    %v326 = vld [vmem:[#allocation5 + $0x590] sm:$0xff]
    %v327 = vld [vmem:[#allocation5 + $0x598] sm:$0xff]
    %v328 = vld [vmem:[#allocation5 + $0x5a0] sm:$0xff]
    %v329 = vld [vmem:[#allocation5 + $0x5a8] sm:$0xff]
    %v330 = vld [vmem:[#allocation5 + $0x5b0] sm:$0xff]
    %v331 = vld [vmem:[#allocation5 + $0x5b8] sm:$0xff]
    %v332 = vld [vmem:[#allocation5 + $0x5c0] sm:$0xff]
    %v333 = vld [vmem:[#allocation5 + $0x5c8] sm:$0xff]
    %v334 = vld [vmem:[#allocation5 + $0x5d0] sm:$0xff]
    %v335 = vld [vmem:[#allocation5 + $0x5d8] sm:$0xff]
    %v336 = vld [vmem:[#allocation5 + $0x5e0] sm:$0xff]
    %v337 = vld [vmem:[#allocation5 + $0x5e8] sm:$0xff]
    %v338 = vld [vmem:[#allocation5 + $0x5f0] sm:$0xff]
    %v339 = vld [vmem:[#allocation5 + $0x5f8] sm:$0xff]
    %v340 = vld [vmem:[#allocation5 + $0x600] sm:$0xff]
    %v341 = vld [vmem:[#allocation5 + $0x608] sm:$0xff]
    %v342 = vld [vmem:[#allocation5 + $0x610] sm:$0xff]
    %v343 = vld [vmem:[#allocation5 + $0x618] sm:$0xff]
    %v344 = vld [vmem:[#allocation5 + $0x620] sm:$0xff]
    %v345 = vld [vmem:[#allocation5 + $0x628] sm:$0xff]
    %v346 = vld [vmem:[#allocation5 + $0x630] sm:$0xff]
    %v347 = vld [vmem:[#allocation5 + $0x638] sm:$0xff]
    %v348 = vld [vmem:[#allocation5 + $0x640] sm:$0xff]
    %v349 = vld [vmem:[#allocation5 + $0x648] sm:$0xff]
    %v350 = vld [vmem:[#allocation5 + $0x650] sm:$0xff]
    %v351 = vld [vmem:[#allocation5 + $0x658] sm:$0xff]
    %v352 = vld [vmem:[#allocation5 + $0x660] sm:$0xff]
    %v353 = vld [vmem:[#allocation5 + $0x668] sm:$0xff]
    %v354 = vld [vmem:[#allocation5 + $0x670] sm:$0xff]
    %v355 = vld [vmem:[#allocation5 + $0x678] sm:$0xff]
    %v356 = vld [vmem:[#allocation5 + $0x680] sm:$0xff]
    %v357 = vld [vmem:[#allocation5 + $0x688] sm:$0xff]
    %v358 = vld [vmem:[#allocation5 + $0x690] sm:$0xff]
    %v359 = vld [vmem:[#allocation5 + $0x698] sm:$0xff]
    %v360 = vld [vmem:[#allocation5 + $0x6a0] sm:$0xff]
    %v361 = vld [vmem:[#allocation5 + $0x6a8] sm:$0xff]
    %v362 = vld [vmem:[#allocation5 + $0x6b0] sm:$0xff]
    %v363 = vld [vmem:[#allocation5 + $0x6b8] sm:$0xff]
    %v364 = vld [vmem:[#allocation5 + $0x6c0] sm:$0xff]
    %v365 = vld [vmem:[#allocation5 + $0x6c8] sm:$0xff]
    %v366 = vld [vmem:[#allocation5 + $0x6d0] sm:$0xff]
    %v367 = vld [vmem:[#allocation5 + $0x6d8] sm:$0xff]
    %v368 = vld [vmem:[#allocation5 + $0x6e0] sm:$0xff]
    %v369 = vld [vmem:[#allocation5 + $0x6e8] sm:$0xff]
    %v370 = vld [vmem:[#allocation5 + $0x6f0] sm:$0xff]
    %v371 = vld [vmem:[#allocation5 + $0x6f8] sm:$0xff]
    %v372 = vld [vmem:[#allocation5 + $0x700] sm:$0xff]
    %v373 = vld [vmem:[#allocation5 + $0x708] sm:$0xff]
    %v374 = vld [vmem:[#allocation5 + $0x710] sm:$0xff]
    %v375 = vld [vmem:[#allocation5 + $0x718] sm:$0xff]
    %v376 = vld [vmem:[#allocation5 + $0x720] sm:$0xff]
    %v377 = vld [vmem:[#allocation5 + $0x728] sm:$0xff]
    %v378 = vld [vmem:[#allocation5 + $0x730] sm:$0xff]
    %v379 = vld [vmem:[#allocation5 + $0x738] sm:$0xff]
    %v380 = vld [vmem:[#allocation5 + $0x740] sm:$0xff]
    %v381 = vld [vmem:[#allocation5 + $0x748] sm:$0xff]
    %v382 = vld [vmem:[#allocation5 + $0x750] sm:$0xff]
    %v383 = vld [vmem:[#allocation5 + $0x758] sm:$0xff]
    %v384 = vld [vmem:[#allocation5 + $0x760] sm:$0xff]
    %v385 = vld [vmem:[#allocation5 + $0x768] sm:$0xff]
    %v386 = vld [vmem:[#allocation5 + $0x770] sm:$0xff]
    %v387 = vld [vmem:[#allocation5 + $0x778] sm:$0xff]
    %v388 = vld [vmem:[#allocation5 + $0x780] sm:$0xff]
    %v389 = vld [vmem:[#allocation5 + $0x788] sm:$0xff]
    %v390 = vld [vmem:[#allocation5 + $0x790] sm:$0xff]
    %v391 = vld [vmem:[#allocation5 + $0x798] sm:$0xff]
    %v392 = vld [vmem:[#allocation5 + $0x7a0] sm:$0xff]
    %v393 = vld [vmem:[#allocation5 + $0x7a8] sm:$0xff]
    %v394 = vld [vmem:[#allocation5 + $0x7b0] sm:$0xff]
    %v395 = vld [vmem:[#allocation5 + $0x7b8] sm:$0xff]
    %v396 = vld [vmem:[#allocation5 + $0x7c0] sm:$0xff]
    %v397 = vld [vmem:[#allocation5 + $0x7c8] sm:$0xff]
    %v398 = vld [vmem:[#allocation5 + $0x7d0] sm:$0xff]
    %v399 = vld [vmem:[#allocation5 + $0x7d8] sm:$0xff]
    %v400 = vld [vmem:[#allocation5 + $0x7e0] sm:$0xff]
    %v401 = vld [vmem:[#allocation5 + $0x7e8] sm:$0xff]
    %v402 = vld [vmem:[#allocation5 + $0x7f0] sm:$0xff]
    %v403 = vld [vmem:[#allocation5 + $0x7f8] sm:$0xff]
    %v404 = vld [vmem:[#allocation5 + $0x800] sm:$0xff]
    %v405 = vld [vmem:[#allocation5 + $0x808] sm:$0xff]
    %v406 = vld [vmem:[#allocation5 + $0x810] sm:$0xff]
    %v407 = vld [vmem:[#allocation5 + $0x818] sm:$0xff]
    %v408 = vld [vmem:[#allocation5 + $0x820] sm:$0xff]
    %v409 = vld [vmem:[#allocation5 + $0x828] sm:$0xff]
    %v410 = vld [vmem:[#allocation5 + $0x830] sm:$0xff]
    %v411 = vld [vmem:[#allocation5 + $0x838] sm:$0xff]
    %v412 = vld [vmem:[#allocation5 + $0x840] sm:$0xff]
    %v413 = vld [vmem:[#allocation5 + $0x848] sm:$0xff]
    %v414 = vld [vmem:[#allocation5 + $0x850] sm:$0xff]
    %v415 = vld [vmem:[#allocation5 + $0x858] sm:$0xff]
    %v416 = vld [vmem:[#allocation5 + $0x860] sm:$0xff]
    %v417 = vld [vmem:[#allocation5 + $0x868] sm:$0xff]
    %v418 = vld [vmem:[#allocation5 + $0x870] sm:$0xff]
    %v419 = vld [vmem:[#allocation5 + $0x878] sm:$0xff]
    %v420 = vld [vmem:[#allocation5 + $0x880] sm:$0xff]
    %v421 = vld [vmem:[#allocation5 + $0x888] sm:$0xff]
    %v422 = vld [vmem:[#allocation5 + $0x890] sm:$0xff]
    %v423 = vld [vmem:[#allocation5 + $0x898] sm:$0xff]
    %v424 = vld [vmem:[#allocation5 + $0x8a0] sm:$0xff]
    %v425 = vld [vmem:[#allocation5 + $0x8a8] sm:$0xff]
    %v426 = vld [vmem:[#allocation5 + $0x8b0] sm:$0xff]
    %v427 = vld [vmem:[#allocation5 + $0x8b8] sm:$0xff]
    %v428 = vld [vmem:[#allocation5 + $0x8c0] sm:$0xff]
    %v429 = vld [vmem:[#allocation5 + $0x8c8] sm:$0xff]
    %v430 = vld [vmem:[#allocation5 + $0x8d0] sm:$0xff]
    %v431 = vld [vmem:[#allocation5 + $0x8d8] sm:$0xff]
    %v432 = vld [vmem:[#allocation5 + $0x8e0] sm:$0xff]
    %v433 = vld [vmem:[#allocation5 + $0x8e8] sm:$0xff]
    %v434 = vld [vmem:[#allocation5 + $0x8f0] sm:$0xff]
    %v435 = vld [vmem:[#allocation5 + $0x8f8] sm:$0xff]
    %v436 = vld [vmem:[#allocation7] sm:$0x3f]
    %v438 = vperm.slane %v436, 0
    %v439 = vperm.slane %v436, 1
    %v440 = vperm.slane %v436, 2
    %v441 = vperm.slane %v436, 3
    %v442 = vperm.slane %v436, 4
    %v443 = vperm.slane %v436, 5
    %v738 = vunpack.c.l.b16 %v148
    %v739 = vunpack.c.h.b16 %v148
    %v740 = vunpack.c.l.b16 %v149
    %v741 = vunpack.c.h.b16 %v149
    %v742 = vunpack.c.l.b16 %v150
    %v743 = vunpack.c.h.b16 %v150
    %v744 = vunpack.c.l.b16 %v151
    %v745 = vunpack.c.h.b16 %v151
    %v746 = vunpack.c.l.b16 %v152
    %v747 = vunpack.c.h.b16 %v152
    %v748 = vunpack.c.l.b16 %v153
    %v749 = vunpack.c.h.b16 %v153
    %v750 = vunpack.c.l.b16 %v154
    %v751 = vunpack.c.h.b16 %v154
    %v752 = vunpack.c.l.b16 %v155
    %v753 = vunpack.c.h.b16 %v155
    %v754 = vunpack.c.l.b16 %v156
    %v755 = vunpack.c.h.b16 %v156
    %v756 = vunpack.c.l.b16 %v157
    %v757 = vunpack.c.h.b16 %v157
    %v758 = vunpack.c.l.b16 %v158
    %v759 = vunpack.c.h.b16 %v158
    %v760 = vunpack.c.l.b16 %v159
    %v761 = vunpack.c.h.b16 %v159
    %v762 = vunpack.c.l.b16 %v160
    %v763 = vunpack.c.h.b16 %v160
    %v764 = vunpack.c.l.b16 %v161
    %v765 = vunpack.c.h.b16 %v161
    %v766 = vunpack.c.l.b16 %v162
    %v767 = vunpack.c.h.b16 %v162
    %v768 = vunpack.c.l.b16 %v163
    %v769 = vunpack.c.h.b16 %v163
    %v770 = vunpack.c.l.b16 %v164
    %v771 = vunpack.c.h.b16 %v164
    %v772 = vunpack.c.l.b16 %v165
    %v773 = vunpack.c.h.b16 %v165
    %v774 = vunpack.c.l.b16 %v166
    %v775 = vunpack.c.h.b16 %v166
    %v776 = vunpack.c.l.b16 %v167
    %v777 = vunpack.c.h.b16 %v167
    %v778 = vunpack.c.l.b16 %v168
    %v779 = vunpack.c.h.b16 %v168
    %v780 = vunpack.c.l.b16 %v169
    %v781 = vunpack.c.h.b16 %v169
    %v782 = vunpack.c.l.b16 %v170
    %v783 = vunpack.c.h.b16 %v170
    %v784 = vunpack.c.l.b16 %v171
    %v785 = vunpack.c.h.b16 %v171
    %v786 = vunpack.c.l.b16 %v172
    %v787 = vunpack.c.h.b16 %v172
    %v788 = vunpack.c.l.b16 %v173
    %v789 = vunpack.c.h.b16 %v173
    %v790 = vunpack.c.l.b16 %v174
    %v791 = vunpack.c.h.b16 %v174
    %v792 = vunpack.c.l.b16 %v175
    %v793 = vunpack.c.h.b16 %v175
    %v794 = vunpack.c.l.b16 %v176
    %v795 = vunpack.c.h.b16 %v176
    %v796 = vunpack.c.l.b16 %v177
    %v797 = vunpack.c.h.b16 %v177
    %v798 = vunpack.c.l.b16 %v178
    %v799 = vunpack.c.h.b16 %v178
    %v800 = vunpack.c.l.b16 %v179
    %v801 = vunpack.c.h.b16 %v179
    %v802 = vunpack.c.l.b16 %v180
    %v803 = vunpack.c.h.b16 %v180
    %v804 = vunpack.c.l.b16 %v181
    %v805 = vunpack.c.h.b16 %v181
    %v806 = vunpack.c.l.b16 %v182
    %v807 = vunpack.c.h.b16 %v182
    %v808 = vunpack.c.l.b16 %v183
    %v809 = vunpack.c.h.b16 %v183
    %v810 = vunpack.c.l.b16 %v184
    %v811 = vunpack.c.h.b16 %v184
    %v812 = vunpack.c.l.b16 %v185
    %v813 = vunpack.c.h.b16 %v185
    %v814 = vunpack.c.l.b16 %v186
    %v815 = vunpack.c.h.b16 %v186
    %v816 = vunpack.c.l.b16 %v187
    %v817 = vunpack.c.h.b16 %v187
    %v818 = vunpack.c.l.b16 %v188
    %v819 = vunpack.c.h.b16 %v188
    %v820 = vunpack.c.l.b16 %v189
    %v821 = vunpack.c.h.b16 %v189
    %v822 = vunpack.c.l.b16 %v190
    %v823 = vunpack.c.h.b16 %v190
    %v824 = vunpack.c.l.b16 %v191
    %v825 = vunpack.c.h.b16 %v191
    %v826 = vunpack.c.l.b16 %v192
    %v827 = vunpack.c.h.b16 %v192
    %v828 = vunpack.c.l.b16 %v193
    %v829 = vunpack.c.h.b16 %v193
    %v830 = vunpack.c.l.b16 %v194
    %v831 = vunpack.c.h.b16 %v194
    %v832 = vunpack.c.l.b16 %v195
    %v833 = vunpack.c.h.b16 %v195
    %v834 = vunpack.c.l.b16 %v196
    %v835 = vunpack.c.h.b16 %v196
    %v836 = vunpack.c.l.b16 %v197
    %v837 = vunpack.c.h.b16 %v197
    %v838 = vunpack.c.l.b16 %v198
    %v839 = vunpack.c.h.b16 %v198
    %v840 = vunpack.c.l.b16 %v199
    %v841 = vunpack.c.h.b16 %v199
    %v842 = vunpack.c.l.b16 %v200
    %v843 = vunpack.c.h.b16 %v200
    %v844 = vunpack.c.l.b16 %v201
    %v845 = vunpack.c.h.b16 %v201
    %v846 = vunpack.c.l.b16 %v202
    %v847 = vunpack.c.h.b16 %v202
    %v848 = vunpack.c.l.b16 %v203
    %v849 = vunpack.c.h.b16 %v203
    %v850 = vunpack.c.l.b16 %v204
    %v851 = vunpack.c.h.b16 %v204
    %v852 = vunpack.c.l.b16 %v205
    %v853 = vunpack.c.h.b16 %v205
    %v854 = vunpack.c.l.b16 %v206
    %v855 = vunpack.c.h.b16 %v206
    %v856 = vunpack.c.l.b16 %v207
    %v857 = vunpack.c.h.b16 %v207
    %v858 = vunpack.c.l.b16 %v208
    %v859 = vunpack.c.h.b16 %v208
    %v860 = vunpack.c.l.b16 %v209
    %v861 = vunpack.c.h.b16 %v209
    %v862 = vunpack.c.l.b16 %v210
    %v863 = vunpack.c.h.b16 %v210
    %v864 = vunpack.c.l.b16 %v211
    %v865 = vunpack.c.h.b16 %v211
    %v866 = vunpack.c.l.b16 %v212
    %v867 = vunpack.c.h.b16 %v212
    %v868 = vunpack.c.l.b16 %v213
    %v869 = vunpack.c.h.b16 %v213
    %v870 = vunpack.c.l.b16 %v214
    %v871 = vunpack.c.h.b16 %v214
    %v872 = vunpack.c.l.b16 %v215
    %v873 = vunpack.c.h.b16 %v215
    %v874 = vunpack.c.l.b16 %v216
    %v875 = vunpack.c.h.b16 %v216
    %v876 = vunpack.c.l.b16 %v217
    %v877 = vunpack.c.h.b16 %v217
    %v878 = vunpack.c.l.b16 %v218
    %v879 = vunpack.c.h.b16 %v218
    %v880 = vunpack.c.l.b16 %v219
    %v881 = vunpack.c.h.b16 %v219
    %v882 = vunpack.c.l.b16 %v220
    %v883 = vunpack.c.h.b16 %v220
    %v884 = vunpack.c.l.b16 %v221
    %v885 = vunpack.c.h.b16 %v221
    %v886 = vunpack.c.l.b16 %v222
    %v887 = vunpack.c.h.b16 %v222
    %v888 = vunpack.c.l.b16 %v223
    %v889 = vunpack.c.h.b16 %v223
    %v890 = vunpack.c.l.b16 %v224
    %v891 = vunpack.c.h.b16 %v224
    %v892 = vunpack.c.l.b16 %v225
    %v893 = vunpack.c.h.b16 %v225
    %v894 = vunpack.c.l.b16 %v226
    %v895 = vunpack.c.h.b16 %v226
    %v896 = vunpack.c.l.b16 %v227
    %v897 = vunpack.c.h.b16 %v227
    %v898 = vunpack.c.l.b16 %v228
    %v899 = vunpack.c.h.b16 %v228
    %v900 = vunpack.c.l.b16 %v229
    %v901 = vunpack.c.h.b16 %v229
    %v902 = vunpack.c.l.b16 %v230
    %v903 = vunpack.c.h.b16 %v230
    %v904 = vunpack.c.l.b16 %v231
    %v905 = vunpack.c.h.b16 %v231
    %v906 = vunpack.c.l.b16 %v232
    %v907 = vunpack.c.h.b16 %v232
    %v908 = vunpack.c.l.b16 %v233
    %v909 = vunpack.c.h.b16 %v233
    %v910 = vunpack.c.l.b16 %v234
    %v911 = vunpack.c.h.b16 %v234
    %v912 = vunpack.c.l.b16 %v235
    %v913 = vunpack.c.h.b16 %v235
    %v914 = vunpack.c.l.b16 %v236
    %v915 = vunpack.c.h.b16 %v236
    %v916 = vunpack.c.l.b16 %v237
    %v917 = vunpack.c.h.b16 %v237
    %v918 = vunpack.c.l.b16 %v238
    %v919 = vunpack.c.h.b16 %v238
    %v920 = vunpack.c.l.b16 %v239
    %v921 = vunpack.c.h.b16 %v239
    %v922 = vunpack.c.l.b16 %v240
    %v923 = vunpack.c.h.b16 %v240
    %v924 = vunpack.c.l.b16 %v241
    %v925 = vunpack.c.h.b16 %v241
    %v926 = vunpack.c.l.b16 %v242
    %v927 = vunpack.c.h.b16 %v242
    %v928 = vunpack.c.l.b16 %v243
    %v929 = vunpack.c.h.b16 %v243
    %v930 = vunpack.c.l.b16 %v244
    %v931 = vunpack.c.h.b16 %v244
    %v932 = vunpack.c.l.b16 %v245
    %v933 = vunpack.c.h.b16 %v245
    %v934 = vunpack.c.l.b16 %v246
    %v935 = vunpack.c.h.b16 %v246
    %v936 = vunpack.c.l.b16 %v247
    %v937 = vunpack.c.h.b16 %v247
    %v938 = vunpack.c.l.b16 %v248
    %v939 = vunpack.c.h.b16 %v248
    %v940 = vunpack.c.l.b16 %v249
    %v941 = vunpack.c.h.b16 %v249
    %v942 = vunpack.c.l.b16 %v250
    %v943 = vunpack.c.h.b16 %v250
    %v944 = vunpack.c.l.b16 %v251
    %v945 = vunpack.c.h.b16 %v251
    %v946 = vunpack.c.l.b16 %v252
    %v947 = vunpack.c.h.b16 %v252
    %v948 = vunpack.c.l.b16 %v253
    %v949 = vunpack.c.h.b16 %v253
    %v950 = vunpack.c.l.b16 %v254
    %v951 = vunpack.c.h.b16 %v254
    %v952 = vunpack.c.l.b16 %v255
    %v953 = vunpack.c.h.b16 %v255
    %v954 = vunpack.c.l.b16 %v256
    %v955 = vunpack.c.h.b16 %v256
    %v956 = vunpack.c.l.b16 %v257
    %v957 = vunpack.c.h.b16 %v257
    %v958 = vunpack.c.l.b16 %v258
    %v959 = vunpack.c.h.b16 %v258
    %v960 = vunpack.c.l.b16 %v259
    %v961 = vunpack.c.h.b16 %v259
    %v962 = vunpack.c.l.b16 %v260
    %v963 = vunpack.c.h.b16 %v260
    %v964 = vunpack.c.l.b16 %v261
    %v965 = vunpack.c.h.b16 %v261
    %v966 = vunpack.c.l.b16 %v262
    %v967 = vunpack.c.h.b16 %v262
    %v968 = vunpack.c.l.b16 %v263
    %v969 = vunpack.c.h.b16 %v263
    %v970 = vunpack.c.l.b16 %v264
    %v971 = vunpack.c.h.b16 %v264
    %v972 = vunpack.c.l.b16 %v265
    %v973 = vunpack.c.h.b16 %v265
    %v974 = vunpack.c.l.b16 %v266
    %v975 = vunpack.c.h.b16 %v266
    %v976 = vunpack.c.l.b16 %v267
    %v977 = vunpack.c.h.b16 %v267
    %v978 = vunpack.c.l.b16 %v268
    %v979 = vunpack.c.h.b16 %v268
    %v980 = vunpack.c.l.b16 %v269
    %v981 = vunpack.c.h.b16 %v269
    %v982 = vunpack.c.l.b16 %v270
    %v983 = vunpack.c.h.b16 %v270
    %v984 = vunpack.c.l.b16 %v271
    %v985 = vunpack.c.h.b16 %v271
    %v986 = vunpack.c.l.b16 %v272
    %v987 = vunpack.c.h.b16 %v272
    %v988 = vunpack.c.l.b16 %v273
    %v989 = vunpack.c.h.b16 %v273
    %v990 = vunpack.c.l.b16 %v274
    %v991 = vunpack.c.h.b16 %v274
    %v992 = vunpack.c.l.b16 %v275
    %v993 = vunpack.c.h.b16 %v275
    %v994 = vunpack.c.l.b16 %v276
    %v995 = vunpack.c.h.b16 %v276
    %v996 = vunpack.c.l.b16 %v277
    %v997 = vunpack.c.h.b16 %v277
    %v998 = vunpack.c.l.b16 %v278
    %v999 = vunpack.c.h.b16 %v278
    %v1000 = vunpack.c.l.b16 %v279
    %v1001 = vunpack.c.h.b16 %v279
    %v1002 = vunpack.c.l.b16 %v280
    %v1003 = vunpack.c.h.b16 %v280
    %v1004 = vunpack.c.l.b16 %v281
    %v1005 = vunpack.c.h.b16 %v281
    %v1006 = vunpack.c.l.b16 %v282
    %v1007 = vunpack.c.h.b16 %v282
    %v1008 = vunpack.c.l.b16 %v283
    %v1009 = vunpack.c.h.b16 %v283
    %v1010 = vunpack.c.l.b16 %v284
    %v1011 = vunpack.c.h.b16 %v284
    %v1012 = vunpack.c.l.b16 %v285
    %v1013 = vunpack.c.h.b16 %v285
    %v1014 = vunpack.c.l.b16 %v286
    %v1015 = vunpack.c.h.b16 %v286
    %v1016 = vunpack.c.l.b16 %v287
    %v1017 = vunpack.c.h.b16 %v287
    %v1018 = vunpack.c.l.b16 %v288
    %v1019 = vunpack.c.h.b16 %v288
    %v1020 = vunpack.c.l.b16 %v289
    %v1021 = vunpack.c.h.b16 %v289
    %v1022 = vunpack.c.l.b16 %v290
    %v1023 = vunpack.c.h.b16 %v290
    %v1024 = vunpack.c.l.b16 %v291
    %v1025 = vunpack.c.h.b16 %v291
    %v1026 = vunpack.c.l.b16 %v292
    %v1027 = vunpack.c.h.b16 %v292
    %v1028 = vunpack.c.l.b16 %v293
    %v1029 = vunpack.c.h.b16 %v293
    %v1030 = vunpack.c.l.b16 %v294
    %v1031 = vunpack.c.h.b16 %v294
    %v1032 = vunpack.c.l.b16 %v295
    %v1033 = vunpack.c.h.b16 %v295
    %v1034 = vunpack.c.l.b16 %v296
    %v1035 = vunpack.c.h.b16 %v296
    %v1036 = vunpack.c.l.b16 %v297
    %v1037 = vunpack.c.h.b16 %v297
    %v1038 = vunpack.c.l.b16 %v298
    %v1039 = vunpack.c.h.b16 %v298
    %v1040 = vunpack.c.l.b16 %v299
    %v1041 = vunpack.c.h.b16 %v299
    %v1042 = vunpack.c.l.b16 %v300
    %v1043 = vunpack.c.h.b16 %v300
    %v1044 = vunpack.c.l.b16 %v301
    %v1045 = vunpack.c.h.b16 %v301
    %v1046 = vunpack.c.l.b16 %v302
    %v1047 = vunpack.c.h.b16 %v302
    %v1048 = vunpack.c.l.b16 %v303
    %v1049 = vunpack.c.h.b16 %v303
    %v1050 = vunpack.c.l.b16 %v304
    %v1051 = vunpack.c.h.b16 %v304
    %v1052 = vunpack.c.l.b16 %v305
    %v1053 = vunpack.c.h.b16 %v305
    %v1054 = vunpack.c.l.b16 %v306
    %v1055 = vunpack.c.h.b16 %v306
    %v1056 = vunpack.c.l.b16 %v307
    %v1057 = vunpack.c.h.b16 %v307
    %v1058 = vunpack.c.l.b16 %v308
    %v1059 = vunpack.c.h.b16 %v308
    %v1060 = vunpack.c.l.b16 %v309
    %v1061 = vunpack.c.h.b16 %v309
    %v1062 = vunpack.c.l.b16 %v310
    %v1063 = vunpack.c.h.b16 %v310
    %v1064 = vunpack.c.l.b16 %v311
    %v1065 = vunpack.c.h.b16 %v311
    %v1066 = vunpack.c.l.b16 %v312
    %v1067 = vunpack.c.h.b16 %v312
    %v1068 = vunpack.c.l.b16 %v313
    %v1069 = vunpack.c.h.b16 %v313
    %v1070 = vunpack.c.l.b16 %v314
    %v1071 = vunpack.c.h.b16 %v314
    %v1072 = vunpack.c.l.b16 %v315
    %v1073 = vunpack.c.h.b16 %v315
    %v1074 = vunpack.c.l.b16 %v316
    %v1075 = vunpack.c.h.b16 %v316
    %v1076 = vunpack.c.l.b16 %v317
    %v1077 = vunpack.c.h.b16 %v317
    %v1078 = vunpack.c.l.b16 %v318
    %v1079 = vunpack.c.h.b16 %v318
    %v1080 = vunpack.c.l.b16 %v319
    %v1081 = vunpack.c.h.b16 %v319
    %v1082 = vunpack.c.l.b16 %v320
    %v1083 = vunpack.c.h.b16 %v320
    %v1084 = vunpack.c.l.b16 %v321
    %v1085 = vunpack.c.h.b16 %v321
    %v1086 = vunpack.c.l.b16 %v322
    %v1087 = vunpack.c.h.b16 %v322
    %v1088 = vunpack.c.l.b16 %v323
    %v1089 = vunpack.c.h.b16 %v323
    %v1090 = vunpack.c.l.b16 %v324
    %v1091 = vunpack.c.h.b16 %v324
    %v1092 = vunpack.c.l.b16 %v325
    %v1093 = vunpack.c.h.b16 %v325
    %v1094 = vunpack.c.l.b16 %v326
    %v1095 = vunpack.c.h.b16 %v326
    %v1096 = vunpack.c.l.b16 %v327
    %v1097 = vunpack.c.h.b16 %v327
    %v1098 = vunpack.c.l.b16 %v328
    %v1099 = vunpack.c.h.b16 %v328
    %v1100 = vunpack.c.l.b16 %v329
    %v1101 = vunpack.c.h.b16 %v329
    %v1102 = vunpack.c.l.b16 %v330
    %v1103 = vunpack.c.h.b16 %v330
    %v1104 = vunpack.c.l.b16 %v331
    %v1105 = vunpack.c.h.b16 %v331
    %v1106 = vunpack.c.l.b16 %v332
    %v1107 = vunpack.c.h.b16 %v332
    %v1108 = vunpack.c.l.b16 %v333
    %v1109 = vunpack.c.h.b16 %v333
    %v1110 = vunpack.c.l.b16 %v334
    %v1111 = vunpack.c.h.b16 %v334
    %v1112 = vunpack.c.l.b16 %v335
    %v1113 = vunpack.c.h.b16 %v335
    %v1114 = vunpack.c.l.b16 %v336
    %v1115 = vunpack.c.h.b16 %v336
    %v1116 = vunpack.c.l.b16 %v337
    %v1117 = vunpack.c.h.b16 %v337
    %v1118 = vunpack.c.l.b16 %v338
    %v1119 = vunpack.c.h.b16 %v338
    %v1120 = vunpack.c.l.b16 %v339
    %v1121 = vunpack.c.h.b16 %v339
    %v1122 = vunpack.c.l.b16 %v340
    %v1123 = vunpack.c.h.b16 %v340
    %v1124 = vunpack.c.l.b16 %v341
    %v1125 = vunpack.c.h.b16 %v341
    %v1126 = vunpack.c.l.b16 %v342
    %v1127 = vunpack.c.h.b16 %v342
    %v1128 = vunpack.c.l.b16 %v343
    %v1129 = vunpack.c.h.b16 %v343
    %v1130 = vunpack.c.l.b16 %v344
    %v1131 = vunpack.c.h.b16 %v344
    %v1132 = vunpack.c.l.b16 %v345
    %v1133 = vunpack.c.h.b16 %v345
    %v1134 = vunpack.c.l.b16 %v346
    %v1135 = vunpack.c.h.b16 %v346
    %v1136 = vunpack.c.l.b16 %v347
    %v1137 = vunpack.c.h.b16 %v347
    %v1138 = vunpack.c.l.b16 %v348
    %v1139 = vunpack.c.h.b16 %v348
    %v1140 = vunpack.c.l.b16 %v349
    %v1141 = vunpack.c.h.b16 %v349
    %v1142 = vunpack.c.l.b16 %v350
    %v1143 = vunpack.c.h.b16 %v350
    %v1144 = vunpack.c.l.b16 %v351
    %v1145 = vunpack.c.h.b16 %v351
    %v1146 = vunpack.c.l.b16 %v352
    %v1147 = vunpack.c.h.b16 %v352
    %v1148 = vunpack.c.l.b16 %v353
    %v1149 = vunpack.c.h.b16 %v353
    %v1150 = vunpack.c.l.b16 %v354
    %v1151 = vunpack.c.h.b16 %v354
    %v1152 = vunpack.c.l.b16 %v355
    %v1153 = vunpack.c.h.b16 %v355
    %v1154 = vunpack.c.l.b16 %v356
    %v1155 = vunpack.c.h.b16 %v356
    %v1156 = vunpack.c.l.b16 %v357
    %v1157 = vunpack.c.h.b16 %v357
    %v1158 = vunpack.c.l.b16 %v358
    %v1159 = vunpack.c.h.b16 %v358
    %v1160 = vunpack.c.l.b16 %v359
    %v1161 = vunpack.c.h.b16 %v359
    %v1162 = vunpack.c.l.b16 %v360
    %v1163 = vunpack.c.h.b16 %v360
    %v1164 = vunpack.c.l.b16 %v361
    %v1165 = vunpack.c.h.b16 %v361
    %v1166 = vunpack.c.l.b16 %v362
    %v1167 = vunpack.c.h.b16 %v362
    %v1168 = vunpack.c.l.b16 %v363
    %v1169 = vunpack.c.h.b16 %v363
    %v1170 = vunpack.c.l.b16 %v364
    %v1171 = vunpack.c.h.b16 %v364
    %v1172 = vunpack.c.l.b16 %v365
    %v1173 = vunpack.c.h.b16 %v365
    %v1174 = vunpack.c.l.b16 %v366
    %v1175 = vunpack.c.h.b16 %v366
    %v1176 = vunpack.c.l.b16 %v367
    %v1177 = vunpack.c.h.b16 %v367
    %v1178 = vunpack.c.l.b16 %v368
    %v1179 = vunpack.c.h.b16 %v368
    %v1180 = vunpack.c.l.b16 %v369
    %v1181 = vunpack.c.h.b16 %v369
    %v1182 = vunpack.c.l.b16 %v370
    %v1183 = vunpack.c.h.b16 %v370
    %v1184 = vunpack.c.l.b16 %v371
    %v1185 = vunpack.c.h.b16 %v371
    %v1186 = vunpack.c.l.b16 %v372
    %v1187 = vunpack.c.h.b16 %v372
    %v1188 = vunpack.c.l.b16 %v373
    %v1189 = vunpack.c.h.b16 %v373
    %v1190 = vunpack.c.l.b16 %v374
    %v1191 = vunpack.c.h.b16 %v374
    %v1192 = vunpack.c.l.b16 %v375
    %v1193 = vunpack.c.h.b16 %v375
    %v1194 = vunpack.c.l.b16 %v376
    %v1195 = vunpack.c.h.b16 %v376
    %v1196 = vunpack.c.l.b16 %v377
    %v1197 = vunpack.c.h.b16 %v377
    %v1198 = vunpack.c.l.b16 %v378
    %v1199 = vunpack.c.h.b16 %v378
    %v1200 = vunpack.c.l.b16 %v379
    %v1201 = vunpack.c.h.b16 %v379
    %v1202 = vunpack.c.l.b16 %v380
    %v1203 = vunpack.c.h.b16 %v380
    %v1204 = vunpack.c.l.b16 %v381
    %v1205 = vunpack.c.h.b16 %v381
    %v1206 = vunpack.c.l.b16 %v382
    %v1207 = vunpack.c.h.b16 %v382
    %v1208 = vunpack.c.l.b16 %v383
    %v1209 = vunpack.c.h.b16 %v383
    %v1210 = vunpack.c.l.b16 %v384
    %v1211 = vunpack.c.h.b16 %v384
    %v1212 = vunpack.c.l.b16 %v385
    %v1213 = vunpack.c.h.b16 %v385
    %v1214 = vunpack.c.l.b16 %v386
    %v1215 = vunpack.c.h.b16 %v386
    %v1216 = vunpack.c.l.b16 %v387
    %v1217 = vunpack.c.h.b16 %v387
    %v1218 = vunpack.c.l.b16 %v388
    %v1219 = vunpack.c.h.b16 %v388
    %v1220 = vunpack.c.l.b16 %v389
    %v1221 = vunpack.c.h.b16 %v389
    %v1222 = vunpack.c.l.b16 %v390
    %v1223 = vunpack.c.h.b16 %v390
    %v1224 = vunpack.c.l.b16 %v391
    %v1225 = vunpack.c.h.b16 %v391
    %v1226 = vunpack.c.l.b16 %v392
    %v1227 = vunpack.c.h.b16 %v392
    %v1228 = vunpack.c.l.b16 %v393
    %v1229 = vunpack.c.h.b16 %v393
    %v1230 = vunpack.c.l.b16 %v394
    %v1231 = vunpack.c.h.b16 %v394
    %v1232 = vunpack.c.l.b16 %v395
    %v1233 = vunpack.c.h.b16 %v395
    %v1234 = vunpack.c.l.b16 %v396
    %v1235 = vunpack.c.h.b16 %v396
    %v1236 = vunpack.c.l.b16 %v397
    %v1237 = vunpack.c.h.b16 %v397
    %v1238 = vunpack.c.l.b16 %v398
    %v1239 = vunpack.c.h.b16 %v398
    %v1240 = vunpack.c.l.b16 %v399
    %v1241 = vunpack.c.h.b16 %v399
    %v1242 = vunpack.c.l.b16 %v400
    %v1243 = vunpack.c.h.b16 %v400
    %v1244 = vunpack.c.l.b16 %v401
    %v1245 = vunpack.c.h.b16 %v401
    %v1246 = vunpack.c.l.b16 %v402
    %v1247 = vunpack.c.h.b16 %v402
    %v1248 = vunpack.c.l.b16 %v403
    %v1249 = vunpack.c.h.b16 %v403
    %v1250 = vunpack.c.l.b16 %v404
    %v1251 = vunpack.c.h.b16 %v404
    %v1252 = vunpack.c.l.b16 %v405
    %v1253 = vunpack.c.h.b16 %v405
    %v1254 = vunpack.c.l.b16 %v406
    %v1255 = vunpack.c.h.b16 %v406
    %v1256 = vunpack.c.l.b16 %v407
    %v1257 = vunpack.c.h.b16 %v407
    %v1258 = vunpack.c.l.b16 %v408
    %v1259 = vunpack.c.h.b16 %v408
    %v1260 = vunpack.c.l.b16 %v409
    %v1261 = vunpack.c.h.b16 %v409
    %v1262 = vunpack.c.l.b16 %v410
    %v1263 = vunpack.c.h.b16 %v410
    %v1264 = vunpack.c.l.b16 %v411
    %v1265 = vunpack.c.h.b16 %v411
    %v1266 = vunpack.c.l.b16 %v412
    %v1267 = vunpack.c.h.b16 %v412
    %v1268 = vunpack.c.l.b16 %v413
    %v1269 = vunpack.c.h.b16 %v413
    %v1270 = vunpack.c.l.b16 %v414
    %v1271 = vunpack.c.h.b16 %v414
    %v1272 = vunpack.c.l.b16 %v415
    %v1273 = vunpack.c.h.b16 %v415
    %v1274 = vunpack.c.l.b16 %v416
    %v1275 = vunpack.c.h.b16 %v416
    %v1276 = vunpack.c.l.b16 %v417
    %v1277 = vunpack.c.h.b16 %v417
    %v1278 = vunpack.c.l.b16 %v418
    %v1279 = vunpack.c.h.b16 %v418
    %v1280 = vunpack.c.l.b16 %v419
    %v1281 = vunpack.c.h.b16 %v419
    %v1282 = vunpack.c.l.b16 %v420
    %v1283 = vunpack.c.h.b16 %v420
    %v1284 = vunpack.c.l.b16 %v421
    %v1285 = vunpack.c.h.b16 %v421
    %v1286 = vunpack.c.l.b16 %v422
    %v1287 = vunpack.c.h.b16 %v422
    %v1288 = vunpack.c.l.b16 %v423
    %v1289 = vunpack.c.h.b16 %v423
    %v1290 = vunpack.c.l.b16 %v424
    %v1291 = vunpack.c.h.b16 %v424
    %v1292 = vunpack.c.l.b16 %v425
    %v1293 = vunpack.c.h.b16 %v425
    %v1294 = vunpack.c.l.b16 %v426
    %v1295 = vunpack.c.h.b16 %v426
    %v1296 = vunpack.c.l.b16 %v427
    %v1297 = vunpack.c.h.b16 %v427
    %v1298 = vunpack.c.l.b16 %v428
    %v1299 = vunpack.c.h.b16 %v428
    %v1300 = vunpack.c.l.b16 %v429
    %v1301 = vunpack.c.h.b16 %v429
    %v1302 = vunpack.c.l.b16 %v430
    %v1303 = vunpack.c.h.b16 %v430
    %v1304 = vunpack.c.l.b16 %v431
    %v1305 = vunpack.c.h.b16 %v431
    %v1306 = vunpack.c.l.b16 %v432
    %v1307 = vunpack.c.h.b16 %v432
    %v1308 = vunpack.c.l.b16 %v433
    %v1309 = vunpack.c.h.b16 %v433
    %v1310 = vunpack.c.l.b16 %v434
    %v1311 = vunpack.c.h.b16 %v434
    %v1312 = vunpack.c.l.b16 %v435
    %v1313 = vunpack.c.h.b16 %v435
    %v1314 = vpack.c.b16 %v744, %v738
    %v1315 = vpack.c.b16 %v745, %v739
    %v1316 = vpack.c.b16 %v746, %v740
    %v1317 = vpack.c.b16 %v747, %v741
    %v1318 = vpack.c.b16 %v748, %v742
    %v1319 = vpack.c.b16 %v749, %v743
    %v1320 = vpack.c.b16 %v756, %v750
    %v1321 = vpack.c.b16 %v757, %v751
    %v1322 = vpack.c.b16 %v758, %v752
    %v1323 = vpack.c.b16 %v759, %v753
    %v1324 = vpack.c.b16 %v760, %v754
    %v1325 = vpack.c.b16 %v761, %v755
    %v1326 = vpack.c.b16 %v768, %v762
    %v1327 = vpack.c.b16 %v769, %v763
    %v1328 = vpack.c.b16 %v770, %v764
    %v1329 = vpack.c.b16 %v771, %v765
    %v1330 = vpack.c.b16 %v772, %v766
    %v1331 = vpack.c.b16 %v773, %v767
    %v1332 = vpack.c.b16 %v780, %v774
    %v1333 = vpack.c.b16 %v781, %v775
    %v1334 = vpack.c.b16 %v782, %v776
    %v1335 = vpack.c.b16 %v783, %v777
    %v1336 = vpack.c.b16 %v784, %v778
    %v1337 = vpack.c.b16 %v785, %v779
    %v1338 = vpack.c.b16 %v792, %v786
    %v1339 = vpack.c.b16 %v793, %v787
    %v1340 = vpack.c.b16 %v794, %v788
    %v1341 = vpack.c.b16 %v795, %v789
    %v1342 = vpack.c.b16 %v796, %v790
    %v1343 = vpack.c.b16 %v797, %v791
    %v1344 = vpack.c.b16 %v804, %v798
    %v1345 = vpack.c.b16 %v805, %v799
    %v1346 = vpack.c.b16 %v806, %v800
    %v1347 = vpack.c.b16 %v807, %v801
    %v1348 = vpack.c.b16 %v808, %v802
    %v1349 = vpack.c.b16 %v809, %v803
    %v1350 = vpack.c.b16 %v816, %v810
    %v1351 = vpack.c.b16 %v817, %v811
    %v1352 = vpack.c.b16 %v818, %v812
    %v1353 = vpack.c.b16 %v819, %v813
    %v1354 = vpack.c.b16 %v820, %v814
    %v1355 = vpack.c.b16 %v821, %v815
    %v1356 = vpack.c.b16 %v828, %v822
    %v1357 = vpack.c.b16 %v829, %v823
    %v1358 = vpack.c.b16 %v830, %v824
    %v1359 = vpack.c.b16 %v831, %v825
    %v1360 = vpack.c.b16 %v832, %v826
    %v1361 = vpack.c.b16 %v833, %v827
    %v1362 = vpack.c.b16 %v840, %v834
    %v1363 = vpack.c.b16 %v841, %v835
    %v1364 = vpack.c.b16 %v842, %v836
    %v1365 = vpack.c.b16 %v843, %v837
    %v1366 = vpack.c.b16 %v844, %v838
    %v1367 = vpack.c.b16 %v845, %v839
    %v1368 = vpack.c.b16 %v852, %v846
    %v1369 = vpack.c.b16 %v853, %v847
    %v1370 = vpack.c.b16 %v854, %v848
    %v1371 = vpack.c.b16 %v855, %v849
    %v1372 = vpack.c.b16 %v856, %v850
    %v1373 = vpack.c.b16 %v857, %v851
    %v1374 = vpack.c.b16 %v864, %v858
    %v1375 = vpack.c.b16 %v865, %v859
    %v1376 = vpack.c.b16 %v866, %v860
    %v1377 = vpack.c.b16 %v867, %v861
    %v1378 = vpack.c.b16 %v868, %v862
    %v1379 = vpack.c.b16 %v869, %v863
    %v1380 = vpack.c.b16 %v876, %v870
    %v1381 = vpack.c.b16 %v877, %v871
    %v1382 = vpack.c.b16 %v878, %v872
    %v1383 = vpack.c.b16 %v879, %v873
    %v1384 = vpack.c.b16 %v880, %v874
    %v1385 = vpack.c.b16 %v881, %v875
    %v1386 = vpack.c.b16 %v888, %v882
    %v1387 = vpack.c.b16 %v889, %v883
    %v1388 = vpack.c.b16 %v890, %v884
    %v1389 = vpack.c.b16 %v891, %v885
    %v1390 = vpack.c.b16 %v892, %v886
    %v1391 = vpack.c.b16 %v893, %v887
    %v1392 = vpack.c.b16 %v900, %v894
    %v1393 = vpack.c.b16 %v901, %v895
    %v1394 = vpack.c.b16 %v902, %v896
    %v1395 = vpack.c.b16 %v903, %v897
    %v1396 = vpack.c.b16 %v904, %v898
    %v1397 = vpack.c.b16 %v905, %v899
    %v1398 = vpack.c.b16 %v912, %v906
    %v1399 = vpack.c.b16 %v913, %v907
    %v1400 = vpack.c.b16 %v914, %v908
    %v1401 = vpack.c.b16 %v915, %v909
    %v1402 = vpack.c.b16 %v916, %v910
    %v1403 = vpack.c.b16 %v917, %v911
    %v1404 = vpack.c.b16 %v924, %v918
    %v1405 = vpack.c.b16 %v925, %v919
    %v1406 = vpack.c.b16 %v926, %v920
    %v1407 = vpack.c.b16 %v927, %v921
    %v1408 = vpack.c.b16 %v928, %v922
    %v1409 = vpack.c.b16 %v929, %v923
    %v1410 = vpack.c.b16 %v936, %v930
    %v1411 = vpack.c.b16 %v937, %v931
    %v1412 = vpack.c.b16 %v938, %v932
    %v1413 = vpack.c.b16 %v939, %v933
    %v1414 = vpack.c.b16 %v940, %v934
    %v1415 = vpack.c.b16 %v941, %v935
    %v1416 = vpack.c.b16 %v948, %v942
    %v1417 = vpack.c.b16 %v949, %v943
    %v1418 = vpack.c.b16 %v950, %v944
    %v1419 = vpack.c.b16 %v951, %v945
    %v1420 = vpack.c.b16 %v952, %v946
    %v1421 = vpack.c.b16 %v953, %v947
    %v1422 = vpack.c.b16 %v960, %v954
    %v1423 = vpack.c.b16 %v961, %v955
    %v1424 = vpack.c.b16 %v962, %v956
    %v1425 = vpack.c.b16 %v963, %v957
    %v1426 = vpack.c.b16 %v964, %v958
    %v1427 = vpack.c.b16 %v965, %v959
    %v1428 = vpack.c.b16 %v972, %v966
    %v1429 = vpack.c.b16 %v973, %v967
    %v1430 = vpack.c.b16 %v974, %v968
    %v1431 = vpack.c.b16 %v975, %v969
    %v1432 = vpack.c.b16 %v976, %v970
    %v1433 = vpack.c.b16 %v977, %v971
    %v1434 = vpack.c.b16 %v984, %v978
    %v1435 = vpack.c.b16 %v985, %v979
    %v1436 = vpack.c.b16 %v986, %v980
    %v1437 = vpack.c.b16 %v987, %v981
    %v1438 = vpack.c.b16 %v988, %v982
    %v1439 = vpack.c.b16 %v989, %v983
    %v1440 = vpack.c.b16 %v996, %v990
    %v1441 = vpack.c.b16 %v997, %v991
    %v1442 = vpack.c.b16 %v998, %v992
    %v1443 = vpack.c.b16 %v999, %v993
    %v1444 = vpack.c.b16 %v1000, %v994
    %v1445 = vpack.c.b16 %v1001, %v995
    %v1446 = vpack.c.b16 %v1008, %v1002
    %v1447 = vpack.c.b16 %v1009, %v1003
    %v1448 = vpack.c.b16 %v1010, %v1004
    %v1449 = vpack.c.b16 %v1011, %v1005
    %v1450 = vpack.c.b16 %v1012, %v1006
    %v1451 = vpack.c.b16 %v1013, %v1007
    %v1452 = vpack.c.b16 %v1020, %v1014
    %v1453 = vpack.c.b16 %v1021, %v1015
    %v1454 = vpack.c.b16 %v1022, %v1016
    %v1455 = vpack.c.b16 %v1023, %v1017
    %v1456 = vpack.c.b16 %v1024, %v1018
    %v1457 = vpack.c.b16 %v1025, %v1019
    %v1458 = vpack.c.b16 %v1032, %v1026
    %v1459 = vpack.c.b16 %v1033, %v1027
    %v1460 = vpack.c.b16 %v1034, %v1028
    %v1461 = vpack.c.b16 %v1035, %v1029
    %v1462 = vpack.c.b16 %v1036, %v1030
    %v1463 = vpack.c.b16 %v1037, %v1031
    %v1464 = vpack.c.b16 %v1044, %v1038
    %v1465 = vpack.c.b16 %v1045, %v1039
    %v1466 = vpack.c.b16 %v1046, %v1040
    %v1467 = vpack.c.b16 %v1047, %v1041
    %v1468 = vpack.c.b16 %v1048, %v1042
    %v1469 = vpack.c.b16 %v1049, %v1043
    %v1470 = vpack.c.b16 %v1056, %v1050
    %v1471 = vpack.c.b16 %v1057, %v1051
    %v1472 = vpack.c.b16 %v1058, %v1052
    %v1473 = vpack.c.b16 %v1059, %v1053
    %v1474 = vpack.c.b16 %v1060, %v1054
    %v1475 = vpack.c.b16 %v1061, %v1055
    %v1476 = vpack.c.b16 %v1068, %v1062
    %v1477 = vpack.c.b16 %v1069, %v1063
    %v1478 = vpack.c.b16 %v1070, %v1064
    %v1479 = vpack.c.b16 %v1071, %v1065
    %v1480 = vpack.c.b16 %v1072, %v1066
    %v1481 = vpack.c.b16 %v1073, %v1067
    %v1482 = vpack.c.b16 %v1080, %v1074
    %v1483 = vpack.c.b16 %v1081, %v1075
    %v1484 = vpack.c.b16 %v1082, %v1076
    %v1485 = vpack.c.b16 %v1083, %v1077
    %v1486 = vpack.c.b16 %v1084, %v1078
    %v1487 = vpack.c.b16 %v1085, %v1079
    %v1488 = vpack.c.b16 %v1092, %v1086
    %v1489 = vpack.c.b16 %v1093, %v1087
    %v1490 = vpack.c.b16 %v1094, %v1088
    %v1491 = vpack.c.b16 %v1095, %v1089
    %v1492 = vpack.c.b16 %v1096, %v1090
    %v1493 = vpack.c.b16 %v1097, %v1091
    %v1494 = vpack.c.b16 %v1104, %v1098
    %v1495 = vpack.c.b16 %v1105, %v1099
    %v1496 = vpack.c.b16 %v1106, %v1100
    %v1497 = vpack.c.b16 %v1107, %v1101
    %v1498 = vpack.c.b16 %v1108, %v1102
    %v1499 = vpack.c.b16 %v1109, %v1103
    %v1500 = vpack.c.b16 %v1116, %v1110
    %v1501 = vpack.c.b16 %v1117, %v1111
    %v1502 = vpack.c.b16 %v1118, %v1112
    %v1503 = vpack.c.b16 %v1119, %v1113
    %v1504 = vpack.c.b16 %v1120, %v1114
    %v1505 = vpack.c.b16 %v1121, %v1115
    %v1506 = vpack.c.b16 %v1128, %v1122
    %v1507 = vpack.c.b16 %v1129, %v1123
    %v1508 = vpack.c.b16 %v1130, %v1124
    %v1509 = vpack.c.b16 %v1131, %v1125
    %v1510 = vpack.c.b16 %v1132, %v1126
    %v1511 = vpack.c.b16 %v1133, %v1127
    %v1512 = vpack.c.b16 %v1140, %v1134
    %v1513 = vpack.c.b16 %v1141, %v1135
    %v1514 = vpack.c.b16 %v1142, %v1136
    %v1515 = vpack.c.b16 %v1143, %v1137
    %v1516 = vpack.c.b16 %v1144, %v1138
    %v1517 = vpack.c.b16 %v1145, %v1139
    %v1518 = vpack.c.b16 %v1152, %v1146
    %v1519 = vpack.c.b16 %v1153, %v1147
    %v1520 = vpack.c.b16 %v1154, %v1148
    %v1521 = vpack.c.b16 %v1155, %v1149
    %v1522 = vpack.c.b16 %v1156, %v1150
    %v1523 = vpack.c.b16 %v1157, %v1151
    %v1524 = vpack.c.b16 %v1164, %v1158
    %v1525 = vpack.c.b16 %v1165, %v1159
    %v1526 = vpack.c.b16 %v1166, %v1160
    %v1527 = vpack.c.b16 %v1167, %v1161
    %v1528 = vpack.c.b16 %v1168, %v1162
    %v1529 = vpack.c.b16 %v1169, %v1163
    %v1530 = vpack.c.b16 %v1176, %v1170
    %v1531 = vpack.c.b16 %v1177, %v1171
    %v1532 = vpack.c.b16 %v1178, %v1172
    %v1533 = vpack.c.b16 %v1179, %v1173
    %v1534 = vpack.c.b16 %v1180, %v1174
    %v1535 = vpack.c.b16 %v1181, %v1175
    %v1536 = vpack.c.b16 %v1188, %v1182
    %v1537 = vpack.c.b16 %v1189, %v1183
    %v1538 = vpack.c.b16 %v1190, %v1184
    %v1539 = vpack.c.b16 %v1191, %v1185
    %v1540 = vpack.c.b16 %v1192, %v1186
    %v1541 = vpack.c.b16 %v1193, %v1187
    %v1542 = vpack.c.b16 %v1200, %v1194
    %v1543 = vpack.c.b16 %v1201, %v1195
    %v1544 = vpack.c.b16 %v1202, %v1196
    %v1545 = vpack.c.b16 %v1203, %v1197
    %v1546 = vpack.c.b16 %v1204, %v1198
    %v1547 = vpack.c.b16 %v1205, %v1199
    %v1548 = vpack.c.b16 %v1212, %v1206
    %v1549 = vpack.c.b16 %v1213, %v1207
    %v1550 = vpack.c.b16 %v1214, %v1208
    %v1551 = vpack.c.b16 %v1215, %v1209
    %v1552 = vpack.c.b16 %v1216, %v1210
    %v1553 = vpack.c.b16 %v1217, %v1211
    %v1554 = vpack.c.b16 %v1224, %v1218
    %v1555 = vpack.c.b16 %v1225, %v1219
    %v1556 = vpack.c.b16 %v1226, %v1220
    %v1557 = vpack.c.b16 %v1227, %v1221
    %v1558 = vpack.c.b16 %v1228, %v1222
    %v1559 = vpack.c.b16 %v1229, %v1223
    %v1560 = vpack.c.b16 %v1236, %v1230
    %v1561 = vpack.c.b16 %v1237, %v1231
    %v1562 = vpack.c.b16 %v1238, %v1232
    %v1563 = vpack.c.b16 %v1239, %v1233
    %v1564 = vpack.c.b16 %v1240, %v1234
    %v1565 = vpack.c.b16 %v1241, %v1235
    %v1566 = vpack.c.b16 %v1248, %v1242
    %v1567 = vpack.c.b16 %v1249, %v1243
    %v1568 = vpack.c.b16 %v1250, %v1244
    %v1569 = vpack.c.b16 %v1251, %v1245
    %v1570 = vpack.c.b16 %v1252, %v1246
    %v1571 = vpack.c.b16 %v1253, %v1247
    %v1572 = vpack.c.b16 %v1260, %v1254
    %v1573 = vpack.c.b16 %v1261, %v1255
    %v1574 = vpack.c.b16 %v1262, %v1256
    %v1575 = vpack.c.b16 %v1263, %v1257
    %v1576 = vpack.c.b16 %v1264, %v1258
    %v1577 = vpack.c.b16 %v1265, %v1259
    %v1578 = vpack.c.b16 %v1272, %v1266
    %v1579 = vpack.c.b16 %v1273, %v1267
    %v1580 = vpack.c.b16 %v1274, %v1268
    %v1581 = vpack.c.b16 %v1275, %v1269
    %v1582 = vpack.c.b16 %v1276, %v1270
    %v1583 = vpack.c.b16 %v1277, %v1271
    %v1584 = vpack.c.b16 %v1284, %v1278
    %v1585 = vpack.c.b16 %v1285, %v1279
    %v1586 = vpack.c.b16 %v1286, %v1280
    %v1587 = vpack.c.b16 %v1287, %v1281
    %v1588 = vpack.c.b16 %v1288, %v1282
    %v1589 = vpack.c.b16 %v1289, %v1283
    %v1590 = vpack.c.b16 %v1296, %v1290
    %v1591 = vpack.c.b16 %v1297, %v1291
    %v1592 = vpack.c.b16 %v1298, %v1292
    %v1593 = vpack.c.b16 %v1299, %v1293
    %v1594 = vpack.c.b16 %v1300, %v1294
    %v1595 = vpack.c.b16 %v1301, %v1295
    %v1596 = vpack.c.b16 %v1308, %v1302
    %v1597 = vpack.c.b16 %v1309, %v1303
    %v1598 = vpack.c.b16 %v1310, %v1304
    %v1599 = vpack.c.b16 %v1311, %v1305
    %v1600 = vpack.c.b16 %v1312, %v1306
    %v1601 = vpack.c.b16 %v1313, %v1307
    %1890 = vmatpush.bf16.msra.mxu0 %v1356
    %1891 = vmatpush.bf16.msra.mxu0 %v1350
    %1892 = vmatpush.bf16.msra.mxu0 %v1344
    %1893 = vmatpush.bf16.msra.mxu0 %v1338
    %1894 = vmatpush.bf16.msra.mxu0 %v1332
    %1895 = vmatpush.bf16.msra.mxu0 %v1326
    %1896 = vmatpush.bf16.msra.mxu0 %v1320
    %1897 = vmatpush.bf16.msra.mxu0 %v1314
    %1898 = vmatmul.bf16.gmra.mxu0 %v142
    %v1899 = vpop.f32.mrf.mxu0
    %v1900 = vadd.f32 %v438, %v1899
    %v1901 = vpop.f32.mrf.mxu0
    %v1902 = vadd.f32 %v438, %v1901
    %1903 = vdwg.mxu0
    %1904 = vmatpush.bf16.msra.mxu0 %v1404
    %1905 = vmatpush.bf16.msra.mxu0 %v1398
    %1906 = vmatpush.bf16.msra.mxu0 %v1392
    %1907 = vmatpush.bf16.msra.mxu0 %v1386
    %1908 = vmatpush.bf16.msra.mxu0 %v1380
    %1909 = vmatpush.bf16.msra.mxu0 %v1374
    %1910 = vmatpush.bf16.msra.mxu0 %v1368
    %1911 = vmatpush.bf16.msra.mxu0 %v1362
    %1912 = vmatmul.bf16.gmra.mxu0 %v143
    %v1913 = vpop.f32.mrf.mxu0
    %v1914 = vadd.f32 %v1900, %v1913
    %v1915 = vpop.f32.mrf.mxu0
    %v1916 = vadd.f32 %v1902, %v1915
    %1917 = vdwg.mxu0
    %1918 = vmatpush.bf16.msra.mxu0 %v1452
    %1919 = vmatpush.bf16.msra.mxu0 %v1446
    %1920 = vmatpush.bf16.msra.mxu0 %v1440
    %1921 = vmatpush.bf16.msra.mxu0 %v1434
    %1922 = vmatpush.bf16.msra.mxu0 %v1428
    %1923 = vmatpush.bf16.msra.mxu0 %v1422
    %1924 = vmatpush.bf16.msra.mxu0 %v1416
    %1925 = vmatpush.bf16.msra.mxu0 %v1410
    %1926 = vmatmul.bf16.gmra.mxu0 %v144
    %v1927 = vpop.f32.mrf.mxu0
    %v1928 = vadd.f32 %v1914, %v1927
    %v1929 = vpop.f32.mrf.mxu0
    %v1930 = vadd.f32 %v1916, %v1929
    %1931 = vdwg.mxu0
    %1932 = vmatpush.bf16.msra.mxu0 %v1500
    %1933 = vmatpush.bf16.msra.mxu0 %v1494
    %1934 = vmatpush.bf16.msra.mxu0 %v1488
    %1935 = vmatpush.bf16.msra.mxu0 %v1482
    %1936 = vmatpush.bf16.msra.mxu0 %v1476
    %1937 = vmatpush.bf16.msra.mxu0 %v1470
    %1938 = vmatpush.bf16.msra.mxu0 %v1464
    %1939 = vmatpush.bf16.msra.mxu0 %v1458
    %1940 = vmatmul.bf16.gmra.mxu0 %v145
    %v1941 = vpop.f32.mrf.mxu0
    %v1942 = vadd.f32 %v1928, %v1941
    %v1943 = vpop.f32.mrf.mxu0
    %v1944 = vadd.f32 %v1930, %v1943
    %1945 = vdwg.mxu0
    %1946 = vmatpush.bf16.msra.mxu0 %v1548
    %1947 = vmatpush.bf16.msra.mxu0 %v1542
    %1948 = vmatpush.bf16.msra.mxu0 %v1536
    %1949 = vmatpush.bf16.msra.mxu0 %v1530
    %1950 = vmatpush.bf16.msra.mxu0 %v1524
    %1951 = vmatpush.bf16.msra.mxu0 %v1518
    %1952 = vmatpush.bf16.msra.mxu0 %v1512
    %1953 = vmatpush.bf16.msra.mxu0 %v1506
    %1954 = vmatmul.bf16.gmra.mxu0 %v146
    %v1955 = vpop.f32.mrf.mxu0
    %v1956 = vadd.f32 %v1942, %v1955
    %v1957 = vpop.f32.mrf.mxu0
    %v1958 = vadd.f32 %v1944, %v1957
    %1959 = vdwg.mxu0
    %1960 = vmatpush.bf16.msra.mxu0 %v1596
    %1961 = vmatpush.bf16.msra.mxu0 %v1590
    %1962 = vmatpush.bf16.msra.mxu0 %v1584
    %1963 = vmatpush.bf16.msra.mxu0 %v1578
    %1964 = vmatpush.bf16.msra.mxu0 %v1572
    %1965 = vmatpush.bf16.msra.mxu0 %v1566
    %1966 = vmatpush.bf16.msra.mxu0 %v1560
    %1967 = vmatpush.bf16.msra.mxu0 %v1554
    %1968 = vmatmul.bf16.gmra.mxu0 %v147
    %v1969 = vpop.f32.mrf.mxu0
    %v1970 = vadd.f32 %v1956, %v1969
    %v1971 = vpop.f32.mrf.mxu0
    %v1972 = vadd.f32 %v1958, %v1971
    %1973 = vdwg.mxu0
    %1974 = vmatpush.bf16.msra.mxu0 %v1357
    %1975 = vmatpush.bf16.msra.mxu0 %v1351
    %1976 = vmatpush.bf16.msra.mxu0 %v1345
    %1977 = vmatpush.bf16.msra.mxu0 %v1339
    %1978 = vmatpush.bf16.msra.mxu0 %v1333
    %1979 = vmatpush.bf16.msra.mxu0 %v1327
    %1980 = vmatpush.bf16.msra.mxu0 %v1321
    %1981 = vmatpush.bf16.msra.mxu0 %v1315
    %1982 = vmatmul.bf16.gmra.mxu0 %v142
    %v1983 = vpop.f32.mrf.mxu0
    %v1984 = vadd.f32 %v439, %v1983
    %v1985 = vpop.f32.mrf.mxu0
    %v1986 = vadd.f32 %v439, %v1985
    %1987 = vdwg.mxu0
    %1988 = vmatpush.bf16.msra.mxu0 %v1405
    %1989 = vmatpush.bf16.msra.mxu0 %v1399
    %1990 = vmatpush.bf16.msra.mxu0 %v1393
    %1991 = vmatpush.bf16.msra.mxu0 %v1387
    %1992 = vmatpush.bf16.msra.mxu0 %v1381
    %1993 = vmatpush.bf16.msra.mxu0 %v1375
    %1994 = vmatpush.bf16.msra.mxu0 %v1369
    %1995 = vmatpush.bf16.msra.mxu0 %v1363
    %1996 = vmatmul.bf16.gmra.mxu0 %v143
    %v1997 = vpop.f32.mrf.mxu0
    %v1998 = vadd.f32 %v1984, %v1997
    %v1999 = vpop.f32.mrf.mxu0
    %v2000 = vadd.f32 %v1986, %v1999
    %2001 = vdwg.mxu0
    %2002 = vmatpush.bf16.msra.mxu0 %v1453
    %2003 = vmatpush.bf16.msra.mxu0 %v1447
    %2004 = vmatpush.bf16.msra.mxu0 %v1441
    %2005 = vmatpush.bf16.msra.mxu0 %v1435
    %2006 = vmatpush.bf16.msra.mxu0 %v1429
    %2007 = vmatpush.bf16.msra.mxu0 %v1423
    %2008 = vmatpush.bf16.msra.mxu0 %v1417
    %2009 = vmatpush.bf16.msra.mxu0 %v1411
    %2010 = vmatmul.bf16.gmra.mxu0 %v144
    %v2011 = vpop.f32.mrf.mxu0
    %v2012 = vadd.f32 %v1998, %v2011
    %v2013 = vpop.f32.mrf.mxu0
    %v2014 = vadd.f32 %v2000, %v2013
    %2015 = vdwg.mxu0
    %2016 = vmatpush.bf16.msra.mxu0 %v1501
    %2017 = vmatpush.bf16.msra.mxu0 %v1495
    %2018 = vmatpush.bf16.msra.mxu0 %v1489
    %2019 = vmatpush.bf16.msra.mxu0 %v1483
    %2020 = vmatpush.bf16.msra.mxu0 %v1477
    %2021 = vmatpush.bf16.msra.mxu0 %v1471
    %2022 = vmatpush.bf16.msra.mxu0 %v1465
    %2023 = vmatpush.bf16.msra.mxu0 %v1459
    %2024 = vmatmul.bf16.gmra.mxu0 %v145
    %v2025 = vpop.f32.mrf.mxu0
    %v2026 = vadd.f32 %v2012, %v2025
    %v2027 = vpop.f32.mrf.mxu0
    %v2028 = vadd.f32 %v2014, %v2027
    %2029 = vdwg.mxu0
    %2030 = vmatpush.bf16.msra.mxu0 %v1549
    %2031 = vmatpush.bf16.msra.mxu0 %v1543
    %2032 = vmatpush.bf16.msra.mxu0 %v1537
    %2033 = vmatpush.bf16.msra.mxu0 %v1531
    %2034 = vmatpush.bf16.msra.mxu0 %v1525
    %2035 = vmatpush.bf16.msra.mxu0 %v1519
    %2036 = vmatpush.bf16.msra.mxu0 %v1513
    %2037 = vmatpush.bf16.msra.mxu0 %v1507
    %2038 = vmatmul.bf16.gmra.mxu0 %v146
    %v2039 = vpop.f32.mrf.mxu0
    %v2040 = vadd.f32 %v2026, %v2039
    %v2041 = vpop.f32.mrf.mxu0
    %v2042 = vadd.f32 %v2028, %v2041
    %2043 = vdwg.mxu0
    %2044 = vmatpush.bf16.msra.mxu0 %v1597
    %2045 = vmatpush.bf16.msra.mxu0 %v1591
    %2046 = vmatpush.bf16.msra.mxu0 %v1585
    %2047 = vmatpush.bf16.msra.mxu0 %v1579
    %2048 = vmatpush.bf16.msra.mxu0 %v1573
    %2049 = vmatpush.bf16.msra.mxu0 %v1567
    %2050 = vmatpush.bf16.msra.mxu0 %v1561
    %2051 = vmatpush.bf16.msra.mxu0 %v1555
    %2052 = vmatmul.bf16.gmra.mxu0 %v147
    %v2053 = vpop.f32.mrf.mxu0
    %v2054 = vadd.f32 %v2040, %v2053
    %v2055 = vpop.f32.mrf.mxu0
    %v2056 = vadd.f32 %v2042, %v2055
    %2057 = vdwg.mxu0
    %2058 = vmatpush.bf16.msra.mxu0 %v1358
    %2059 = vmatpush.bf16.msra.mxu0 %v1352
    %2060 = vmatpush.bf16.msra.mxu0 %v1346
    %2061 = vmatpush.bf16.msra.mxu0 %v1340
    %2062 = vmatpush.bf16.msra.mxu0 %v1334
    %2063 = vmatpush.bf16.msra.mxu0 %v1328
    %2064 = vmatpush.bf16.msra.mxu0 %v1322
    %2065 = vmatpush.bf16.msra.mxu0 %v1316
    %2066 = vmatmul.bf16.gmra.mxu0 %v142
    %v2067 = vpop.f32.mrf.mxu0
    %v2068 = vadd.f32 %v440, %v2067
    %v2069 = vpop.f32.mrf.mxu0
    %v2070 = vadd.f32 %v440, %v2069
    %2071 = vdwg.mxu0
    %2072 = vmatpush.bf16.msra.mxu0 %v1406
    %2073 = vmatpush.bf16.msra.mxu0 %v1400
    %2074 = vmatpush.bf16.msra.mxu0 %v1394
    %2075 = vmatpush.bf16.msra.mxu0 %v1388
    %2076 = vmatpush.bf16.msra.mxu0 %v1382
    %2077 = vmatpush.bf16.msra.mxu0 %v1376
    %2078 = vmatpush.bf16.msra.mxu0 %v1370
    %2079 = vmatpush.bf16.msra.mxu0 %v1364
    %2080 = vmatmul.bf16.gmra.mxu0 %v143
    %v2081 = vpop.f32.mrf.mxu0
    %v2082 = vadd.f32 %v2068, %v2081
    %v2083 = vpop.f32.mrf.mxu0
    %v2084 = vadd.f32 %v2070, %v2083
    %2085 = vdwg.mxu0
    %2086 = vmatpush.bf16.msra.mxu0 %v1454
    %2087 = vmatpush.bf16.msra.mxu0 %v1448
    %2088 = vmatpush.bf16.msra.mxu0 %v1442
    %2089 = vmatpush.bf16.msra.mxu0 %v1436
    %2090 = vmatpush.bf16.msra.mxu0 %v1430
    %2091 = vmatpush.bf16.msra.mxu0 %v1424
    %2092 = vmatpush.bf16.msra.mxu0 %v1418
    %2093 = vmatpush.bf16.msra.mxu0 %v1412
    %2094 = vmatmul.bf16.gmra.mxu0 %v144
    %v2095 = vpop.f32.mrf.mxu0
    %v2096 = vadd.f32 %v2082, %v2095
    %v2097 = vpop.f32.mrf.mxu0
    %v2098 = vadd.f32 %v2084, %v2097
    %2099 = vdwg.mxu0
    %2100 = vmatpush.bf16.msra.mxu0 %v1502
    %2101 = vmatpush.bf16.msra.mxu0 %v1496
    %2102 = vmatpush.bf16.msra.mxu0 %v1490
    %2103 = vmatpush.bf16.msra.mxu0 %v1484
    %2104 = vmatpush.bf16.msra.mxu0 %v1478
    %2105 = vmatpush.bf16.msra.mxu0 %v1472
    %2106 = vmatpush.bf16.msra.mxu0 %v1466
    %2107 = vmatpush.bf16.msra.mxu0 %v1460
    %2108 = vmatmul.bf16.gmra.mxu0 %v145
    %v2109 = vpop.f32.mrf.mxu0
    %v2110 = vadd.f32 %v2096, %v2109
    %v2111 = vpop.f32.mrf.mxu0
    %v2112 = vadd.f32 %v2098, %v2111
    %2113 = vdwg.mxu0
    %2114 = vmatpush.bf16.msra.mxu0 %v1550
    %2115 = vmatpush.bf16.msra.mxu0 %v1544
    %2116 = vmatpush.bf16.msra.mxu0 %v1538
    %2117 = vmatpush.bf16.msra.mxu0 %v1532
    %2118 = vmatpush.bf16.msra.mxu0 %v1526
    %2119 = vmatpush.bf16.msra.mxu0 %v1520
    %2120 = vmatpush.bf16.msra.mxu0 %v1514
    %2121 = vmatpush.bf16.msra.mxu0 %v1508
    %2122 = vmatmul.bf16.gmra.mxu0 %v146
    %v2123 = vpop.f32.mrf.mxu0
    %v2124 = vadd.f32 %v2110, %v2123
    %v2125 = vpop.f32.mrf.mxu0
    %v2126 = vadd.f32 %v2112, %v2125
    %2127 = vdwg.mxu0
    %2128 = vmatpush.bf16.msra.mxu0 %v1598
    %2129 = vmatpush.bf16.msra.mxu0 %v1592
    %2130 = vmatpush.bf16.msra.mxu0 %v1586
    %2131 = vmatpush.bf16.msra.mxu0 %v1580
    %2132 = vmatpush.bf16.msra.mxu0 %v1574
    %2133 = vmatpush.bf16.msra.mxu0 %v1568
    %2134 = vmatpush.bf16.msra.mxu0 %v1562
    %2135 = vmatpush.bf16.msra.mxu0 %v1556
    %2136 = vmatmul.bf16.gmra.mxu0 %v147
    %v2137 = vpop.f32.mrf.mxu0
    %v2138 = vadd.f32 %v2124, %v2137
    %v2139 = vpop.f32.mrf.mxu0
    %v2140 = vadd.f32 %v2126, %v2139
    %2141 = vdwg.mxu0
    %2142 = vmatpush.bf16.msra.mxu0 %v1359
    %2143 = vmatpush.bf16.msra.mxu0 %v1353
    %2144 = vmatpush.bf16.msra.mxu0 %v1347
    %2145 = vmatpush.bf16.msra.mxu0 %v1341
    %2146 = vmatpush.bf16.msra.mxu0 %v1335
    %2147 = vmatpush.bf16.msra.mxu0 %v1329
    %2148 = vmatpush.bf16.msra.mxu0 %v1323
    %2149 = vmatpush.bf16.msra.mxu0 %v1317
    %2150 = vmatmul.bf16.gmra.mxu0 %v142
    %v2151 = vpop.f32.mrf.mxu0
    %v2152 = vadd.f32 %v441, %v2151
    %v2153 = vpop.f32.mrf.mxu0
    %v2154 = vadd.f32 %v441, %v2153
    %2155 = vdwg.mxu0
    %2156 = vmatpush.bf16.msra.mxu0 %v1407
    %2157 = vmatpush.bf16.msra.mxu0 %v1401
    %2158 = vmatpush.bf16.msra.mxu0 %v1395
    %2159 = vmatpush.bf16.msra.mxu0 %v1389
    %2160 = vmatpush.bf16.msra.mxu0 %v1383
    %2161 = vmatpush.bf16.msra.mxu0 %v1377
    %2162 = vmatpush.bf16.msra.mxu0 %v1371
    %2163 = vmatpush.bf16.msra.mxu0 %v1365
    %2164 = vmatmul.bf16.gmra.mxu0 %v143
    %v2165 = vpop.f32.mrf.mxu0
    %v2166 = vadd.f32 %v2152, %v2165
    %v2167 = vpop.f32.mrf.mxu0
    %v2168 = vadd.f32 %v2154, %v2167
    %2169 = vdwg.mxu0
    %2170 = vmatpush.bf16.msra.mxu0 %v1455
    %2171 = vmatpush.bf16.msra.mxu0 %v1449
    %2172 = vmatpush.bf16.msra.mxu0 %v1443
    %2173 = vmatpush.bf16.msra.mxu0 %v1437
    %2174 = vmatpush.bf16.msra.mxu0 %v1431
    %2175 = vmatpush.bf16.msra.mxu0 %v1425
    %2176 = vmatpush.bf16.msra.mxu0 %v1419
    %2177 = vmatpush.bf16.msra.mxu0 %v1413
    %2178 = vmatmul.bf16.gmra.mxu0 %v144
    %v2179 = vpop.f32.mrf.mxu0
    %v2180 = vadd.f32 %v2166, %v2179
    %v2181 = vpop.f32.mrf.mxu0
    %v2182 = vadd.f32 %v2168, %v2181
    %2183 = vdwg.mxu0
    %2184 = vmatpush.bf16.msra.mxu0 %v1503
    %2185 = vmatpush.bf16.msra.mxu0 %v1497
    %2186 = vmatpush.bf16.msra.mxu0 %v1491
    %2187 = vmatpush.bf16.msra.mxu0 %v1485
    %2188 = vmatpush.bf16.msra.mxu0 %v1479
    %2189 = vmatpush.bf16.msra.mxu0 %v1473
    %2190 = vmatpush.bf16.msra.mxu0 %v1467
    %2191 = vmatpush.bf16.msra.mxu0 %v1461
    %2192 = vmatmul.bf16.gmra.mxu0 %v145
    %v2193 = vpop.f32.mrf.mxu0
    %v2194 = vadd.f32 %v2180, %v2193
    %v2195 = vpop.f32.mrf.mxu0
    %v2196 = vadd.f32 %v2182, %v2195
    %2197 = vdwg.mxu0
    %2198 = vmatpush.bf16.msra.mxu0 %v1551
    %2199 = vmatpush.bf16.msra.mxu0 %v1545
    %2200 = vmatpush.bf16.msra.mxu0 %v1539
    %2201 = vmatpush.bf16.msra.mxu0 %v1533
    %2202 = vmatpush.bf16.msra.mxu0 %v1527
    %2203 = vmatpush.bf16.msra.mxu0 %v1521
    %2204 = vmatpush.bf16.msra.mxu0 %v1515
    %2205 = vmatpush.bf16.msra.mxu0 %v1509
    %2206 = vmatmul.bf16.gmra.mxu0 %v146
    %v2207 = vpop.f32.mrf.mxu0
    %v2208 = vadd.f32 %v2194, %v2207
    %v2209 = vpop.f32.mrf.mxu0
    %v2210 = vadd.f32 %v2196, %v2209
    %2211 = vdwg.mxu0
    %2212 = vmatpush.bf16.msra.mxu0 %v1599
    %2213 = vmatpush.bf16.msra.mxu0 %v1593
    %2214 = vmatpush.bf16.msra.mxu0 %v1587
    %2215 = vmatpush.bf16.msra.mxu0 %v1581
    %2216 = vmatpush.bf16.msra.mxu0 %v1575
    %2217 = vmatpush.bf16.msra.mxu0 %v1569
    %2218 = vmatpush.bf16.msra.mxu0 %v1563
    %2219 = vmatpush.bf16.msra.mxu0 %v1557
    %2220 = vmatmul.bf16.gmra.mxu0 %v147
    %v2221 = vpop.f32.mrf.mxu0
    %v2222 = vadd.f32 %v2208, %v2221
    %v2223 = vpop.f32.mrf.mxu0
    %v2224 = vadd.f32 %v2210, %v2223
    %2225 = vdwg.mxu0
    %2226 = vmatpush.bf16.msra.mxu0 %v1360
    %2227 = vmatpush.bf16.msra.mxu0 %v1354
    %2228 = vmatpush.bf16.msra.mxu0 %v1348
    %2229 = vmatpush.bf16.msra.mxu0 %v1342
    %2230 = vmatpush.bf16.msra.mxu0 %v1336
    %2231 = vmatpush.bf16.msra.mxu0 %v1330
    %2232 = vmatpush.bf16.msra.mxu0 %v1324
    %2233 = vmatpush.bf16.msra.mxu0 %v1318
    %2234 = vmatmul.bf16.gmra.mxu0 %v142
    %v2235 = vpop.f32.mrf.mxu0
    %v2236 = vadd.f32 %v442, %v2235
    %v2237 = vpop.f32.mrf.mxu0
    %v2238 = vadd.f32 %v442, %v2237
    %2239 = vdwg.mxu0
    %2240 = vmatpush.bf16.msra.mxu0 %v1408
    %2241 = vmatpush.bf16.msra.mxu0 %v1402
    %2242 = vmatpush.bf16.msra.mxu0 %v1396
    %2243 = vmatpush.bf16.msra.mxu0 %v1390
    %2244 = vmatpush.bf16.msra.mxu0 %v1384
    %2245 = vmatpush.bf16.msra.mxu0 %v1378
    %2246 = vmatpush.bf16.msra.mxu0 %v1372
    %2247 = vmatpush.bf16.msra.mxu0 %v1366
    %2248 = vmatmul.bf16.gmra.mxu0 %v143
    %v2249 = vpop.f32.mrf.mxu0
    %v2250 = vadd.f32 %v2236, %v2249
    %v2251 = vpop.f32.mrf.mxu0
    %v2252 = vadd.f32 %v2238, %v2251
    %2253 = vdwg.mxu0
    %2254 = vmatpush.bf16.msra.mxu0 %v1456
    %2255 = vmatpush.bf16.msra.mxu0 %v1450
    %2256 = vmatpush.bf16.msra.mxu0 %v1444
    %2257 = vmatpush.bf16.msra.mxu0 %v1438
    %2258 = vmatpush.bf16.msra.mxu0 %v1432
    %2259 = vmatpush.bf16.msra.mxu0 %v1426
    %2260 = vmatpush.bf16.msra.mxu0 %v1420
    %2261 = vmatpush.bf16.msra.mxu0 %v1414
    %2262 = vmatmul.bf16.gmra.mxu0 %v144
    %v2263 = vpop.f32.mrf.mxu0
    %v2264 = vadd.f32 %v2250, %v2263
    %v2265 = vpop.f32.mrf.mxu0
    %v2266 = vadd.f32 %v2252, %v2265
    %2267 = vdwg.mxu0
    %2268 = vmatpush.bf16.msra.mxu0 %v1504
    %2269 = vmatpush.bf16.msra.mxu0 %v1498
    %2270 = vmatpush.bf16.msra.mxu0 %v1492
    %2271 = vmatpush.bf16.msra.mxu0 %v1486
    %2272 = vmatpush.bf16.msra.mxu0 %v1480
    %2273 = vmatpush.bf16.msra.mxu0 %v1474
    %2274 = vmatpush.bf16.msra.mxu0 %v1468
    %2275 = vmatpush.bf16.msra.mxu0 %v1462
    %2276 = vmatmul.bf16.gmra.mxu0 %v145
    %v2277 = vpop.f32.mrf.mxu0
    %v2278 = vadd.f32 %v2264, %v2277
    %v2279 = vpop.f32.mrf.mxu0
    %v2280 = vadd.f32 %v2266, %v2279
    %2281 = vdwg.mxu0
    %2282 = vmatpush.bf16.msra.mxu0 %v1552
    %2283 = vmatpush.bf16.msra.mxu0 %v1546
    %2284 = vmatpush.bf16.msra.mxu0 %v1540
    %2285 = vmatpush.bf16.msra.mxu0 %v1534
    %2286 = vmatpush.bf16.msra.mxu0 %v1528
    %2287 = vmatpush.bf16.msra.mxu0 %v1522
    %2288 = vmatpush.bf16.msra.mxu0 %v1516
    %2289 = vmatpush.bf16.msra.mxu0 %v1510
    %2290 = vmatmul.bf16.gmra.mxu0 %v146
    %v2291 = vpop.f32.mrf.mxu0
    %v2292 = vadd.f32 %v2278, %v2291
    %v2293 = vpop.f32.mrf.mxu0
    %v2294 = vadd.f32 %v2280, %v2293
    %2295 = vdwg.mxu0
    %2296 = vmatpush.bf16.msra.mxu0 %v1600
    %2297 = vmatpush.bf16.msra.mxu0 %v1594
    %2298 = vmatpush.bf16.msra.mxu0 %v1588
    %2299 = vmatpush.bf16.msra.mxu0 %v1582
    %2300 = vmatpush.bf16.msra.mxu0 %v1576
    %2301 = vmatpush.bf16.msra.mxu0 %v1570
    %2302 = vmatpush.bf16.msra.mxu0 %v1564
    %2303 = vmatpush.bf16.msra.mxu0 %v1558
    %2304 = vmatmul.bf16.gmra.mxu0 %v147
    %v2305 = vpop.f32.mrf.mxu0
    %v2306 = vadd.f32 %v2292, %v2305
    %v2307 = vpop.f32.mrf.mxu0
    %v2308 = vadd.f32 %v2294, %v2307
    %2309 = vdwg.mxu0
    %2310 = vmatpush.bf16.msra.mxu0 %v1361
    %2311 = vmatpush.bf16.msra.mxu0 %v1355
    %2312 = vmatpush.bf16.msra.mxu0 %v1349
    %2313 = vmatpush.bf16.msra.mxu0 %v1343
    %2314 = vmatpush.bf16.msra.mxu0 %v1337
    %2315 = vmatpush.bf16.msra.mxu0 %v1331
    %2316 = vmatpush.bf16.msra.mxu0 %v1325
    %2317 = vmatpush.bf16.msra.mxu0 %v1319
    %2318 = vmatmul.bf16.gmra.mxu0 %v142
    %v2319 = vpop.f32.mrf.mxu0
    %v2320 = vadd.f32 %v443, %v2319
    %v2321 = vpop.f32.mrf.mxu0
    %v2322 = vadd.f32 %v443, %v2321
    %2323 = vdwg.mxu0
    %2324 = vmatpush.bf16.msra.mxu0 %v1409
    %2325 = vmatpush.bf16.msra.mxu0 %v1403
    %2326 = vmatpush.bf16.msra.mxu0 %v1397
    %2327 = vmatpush.bf16.msra.mxu0 %v1391
    %2328 = vmatpush.bf16.msra.mxu0 %v1385
    %2329 = vmatpush.bf16.msra.mxu0 %v1379
    %2330 = vmatpush.bf16.msra.mxu0 %v1373
    %2331 = vmatpush.bf16.msra.mxu0 %v1367
    %2332 = vmatmul.bf16.gmra.mxu0 %v143
    %v2333 = vpop.f32.mrf.mxu0
    %v2334 = vadd.f32 %v2320, %v2333
    %v2335 = vpop.f32.mrf.mxu0
    %v2336 = vadd.f32 %v2322, %v2335
    %2337 = vdwg.mxu0
    %2338 = vmatpush.bf16.msra.mxu0 %v1457
    %2339 = vmatpush.bf16.msra.mxu0 %v1451
    %2340 = vmatpush.bf16.msra.mxu0 %v1445
    %2341 = vmatpush.bf16.msra.mxu0 %v1439
    %2342 = vmatpush.bf16.msra.mxu0 %v1433
    %2343 = vmatpush.bf16.msra.mxu0 %v1427
    %2344 = vmatpush.bf16.msra.mxu0 %v1421
    %2345 = vmatpush.bf16.msra.mxu0 %v1415
    %2346 = vmatmul.bf16.gmra.mxu0 %v144
    %v2347 = vpop.f32.mrf.mxu0
    %v2348 = vadd.f32 %v2334, %v2347
    %v2349 = vpop.f32.mrf.mxu0
    %v2350 = vadd.f32 %v2336, %v2349
    %2351 = vdwg.mxu0
    %2352 = vmatpush.bf16.msra.mxu0 %v1505
    %2353 = vmatpush.bf16.msra.mxu0 %v1499
    %2354 = vmatpush.bf16.msra.mxu0 %v1493
    %2355 = vmatpush.bf16.msra.mxu0 %v1487
    %2356 = vmatpush.bf16.msra.mxu0 %v1481
    %2357 = vmatpush.bf16.msra.mxu0 %v1475
    %2358 = vmatpush.bf16.msra.mxu0 %v1469
    %2359 = vmatpush.bf16.msra.mxu0 %v1463
    %2360 = vmatmul.bf16.gmra.mxu0 %v145
    %v2361 = vpop.f32.mrf.mxu0
    %v2362 = vadd.f32 %v2348, %v2361
    %v2363 = vpop.f32.mrf.mxu0
    %v2364 = vadd.f32 %v2350, %v2363
    %2365 = vdwg.mxu0
    %2366 = vmatpush.bf16.msra.mxu0 %v1553
    %2367 = vmatpush.bf16.msra.mxu0 %v1547
    %2368 = vmatpush.bf16.msra.mxu0 %v1541
    %2369 = vmatpush.bf16.msra.mxu0 %v1535
    %2370 = vmatpush.bf16.msra.mxu0 %v1529
    %2371 = vmatpush.bf16.msra.mxu0 %v1523
    %2372 = vmatpush.bf16.msra.mxu0 %v1517
    %2373 = vmatpush.bf16.msra.mxu0 %v1511
    %2374 = vmatmul.bf16.gmra.mxu0 %v146
    %v2375 = vpop.f32.mrf.mxu0
    %v2376 = vadd.f32 %v2362, %v2375
    %v2377 = vpop.f32.mrf.mxu0
    %v2378 = vadd.f32 %v2364, %v2377
    %2379 = vdwg.mxu0
    %2380 = vmatpush.bf16.msra.mxu0 %v1601
    %2381 = vmatpush.bf16.msra.mxu0 %v1595
    %2382 = vmatpush.bf16.msra.mxu0 %v1589
    %2383 = vmatpush.bf16.msra.mxu0 %v1583
    %2384 = vmatpush.bf16.msra.mxu0 %v1577
    %2385 = vmatpush.bf16.msra.mxu0 %v1571
    %2386 = vmatpush.bf16.msra.mxu0 %v1565
    %2387 = vmatpush.bf16.msra.mxu0 %v1559
    %2388 = vmatmul.bf16.gmra.mxu0 %v147
    %v2389 = vpop.f32.mrf.mxu0
    %v2390 = vadd.f32 %v2376, %v2389
    %v2391 = vpop.f32.mrf.mxu0
    %v2392 = vadd.f32 %v2378, %v2391
    %2393 = vdwg.mxu0
    %v2394 = vmax.f32 %v1970, 0.0
    %v2395 = vmax.f32 %v2054, 0.0
    %v2396 = vmax.f32 %v2138, 0.0
    %v2397 = vmax.f32 %v2222, 0.0
    %v2398 = vmax.f32 %v2306, 0.0
    %v2399 = vmax.f32 %v2390, 0.0
    %v2400 = vmax.f32 %v1972, 0.0
    %v2401 = vmax.f32 %v2056, 0.0
    %v2402 = vmax.f32 %v2140, 0.0
    %v2403 = vmax.f32 %v2224, 0.0
    %v2404 = vmax.f32 %v2308, 0.0
    %v2405 = vmax.f32 %v2392, 0.0
    %v2406 = vpack.c.bf16 %v2400, %v2394
    %v2407 = vpack.c.bf16 %v2401, %v2395
    %v2408 = vpack.c.bf16 %v2402, %v2396
    %v2409 = vpack.c.bf16 %v2403, %v2397
    %v2410 = vpack.c.bf16 %v2404, %v2398
    %v2411 = vpack.c.bf16 %v2405, %v2399
    %v2412 = vld [vmem:[#allocation8] sm:$0xf]
    %v2413 = vld [vmem:[#allocation8 + $0x4] sm:$0xf]
    %v2414 = vld [vmem:[#allocation8 + $0x8] sm:$0xf]
    %v2415 = vld [vmem:[#allocation8 + $0xc] sm:$0xf]
    %v2416 = vld [vmem:[#allocation8 + $0x10] sm:$0xf]
    %v2417 = vld [vmem:[#allocation8 + $0x14] sm:$0xf]
    %v2418 = vld [vmem:[#allocation8 + $0x18] sm:$0xf]
    %v2419 = vld [vmem:[#allocation8 + $0x1c] sm:$0xf]
    %v2420 = vld [vmem:[#allocation8 + $0x20] sm:$0xf]
    %v2421 = vld [vmem:[#allocation8 + $0x24] sm:$0xf]
    %v2422 = vld [vmem:[#allocation8 + $0x28] sm:$0xf]
    %v2423 = vld [vmem:[#allocation8 + $0x2c] sm:$0xf]
    %v2424 = vld [vmem:[#allocation8 + $0x30] sm:$0xf]
    %v2425 = vld [vmem:[#allocation8 + $0x34] sm:$0xf]
    %v2426 = vld [vmem:[#allocation8 + $0x38] sm:$0xf]
    %v2427 = vld [vmem:[#allocation8 + $0x3c] sm:$0xf]
    %v2428 = vld [vmem:[#allocation8 + $0x40] sm:$0xf]
    %v2429 = vld [vmem:[#allocation8 + $0x44] sm:$0xf]
    %v2430 = vld [vmem:[#allocation8 + $0x48] sm:$0xf]
    %v2431 = vld [vmem:[#allocation8 + $0x4c] sm:$0xf]
    %v2432 = vld [vmem:[#allocation8 + $0x50] sm:$0xf]
    %v2433 = vld [vmem:[#allocation8 + $0x54] sm:$0xf]
    %v2434 = vld [vmem:[#allocation8 + $0x58] sm:$0xf]
    %v2435 = vld [vmem:[#allocation8 + $0x5c] sm:$0xf]
    %v2436 = vld [vmem:[#allocation8 + $0x60] sm:$0xf]
    %v2437 = vld [vmem:[#allocation8 + $0x64] sm:$0xf]
    %v2438 = vld [vmem:[#allocation8 + $0x68] sm:$0xf]
    %v2439 = vld [vmem:[#allocation8 + $0x6c] sm:$0xf]
    %v2440 = vld [vmem:[#allocation8 + $0x70] sm:$0xf]
    %v2441 = vld [vmem:[#allocation8 + $0x74] sm:$0xf]
    %v2442 = vld [vmem:[#allocation8 + $0x78] sm:$0xf]
    %v2443 = vld [vmem:[#allocation8 + $0x7c] sm:$0xf]
    %v2444 = vld [vmem:[#allocation8 + $0x80] sm:$0xf]
    %v2445 = vld [vmem:[#allocation8 + $0x84] sm:$0xf]
    %v2446 = vld [vmem:[#allocation8 + $0x88] sm:$0xf]
    %v2447 = vld [vmem:[#allocation8 + $0x8c] sm:$0xf]
    %v2448 = vld [vmem:[#allocation8 + $0x90] sm:$0xf]
    %v2449 = vld [vmem:[#allocation8 + $0x94] sm:$0xf]
    %v2450 = vld [vmem:[#allocation8 + $0x98] sm:$0xf]
    %v2451 = vld [vmem:[#allocation8 + $0x9c] sm:$0xf]
    %v2452 = vld [vmem:[#allocation8 + $0xa0] sm:$0xf]
    %v2453 = vld [vmem:[#allocation8 + $0xa4] sm:$0xf]
    %v2454 = vld [vmem:[#allocation8 + $0xa8] sm:$0xf]
    %v2455 = vld [vmem:[#allocation8 + $0xac] sm:$0xf]
    %v2456 = vld [vmem:[#allocation8 + $0xb0] sm:$0xf]
    %v2457 = vld [vmem:[#allocation8 + $0xb4] sm:$0xf]
    %v2458 = vld [vmem:[#allocation8 + $0xb8] sm:$0xf]
    %v2459 = vld [vmem:[#allocation8 + $0xbc] sm:$0xf]
    %v2460 = vld [vmem:[#allocation8 + $0xc0] sm:$0xf]
    %v2461 = vld [vmem:[#allocation8 + $0xc4] sm:$0xf]
    %v2462 = vld [vmem:[#allocation8 + $0xc8] sm:$0xf]
    %v2463 = vld [vmem:[#allocation8 + $0xcc] sm:$0xf]
    %v2464 = vld [vmem:[#allocation8 + $0xd0] sm:$0xf]
    %v2465 = vld [vmem:[#allocation8 + $0xd4] sm:$0xf]
    %v2466 = vld [vmem:[#allocation8 + $0xd8] sm:$0xf]
    %v2467 = vld [vmem:[#allocation8 + $0xdc] sm:$0xf]
    %v2468 = vld [vmem:[#allocation8 + $0xe0] sm:$0xf]
    %v2469 = vld [vmem:[#allocation8 + $0xe4] sm:$0xf]
    %v2470 = vld [vmem:[#allocation8 + $0xe8] sm:$0xf]
    %v2471 = vld [vmem:[#allocation8 + $0xec] sm:$0xf]
    %v2472 = vld [vmem:[#allocation8 + $0xf0] sm:$0xf]
    %v2473 = vld [vmem:[#allocation8 + $0xf4] sm:$0xf]
    %v2474 = vld [vmem:[#allocation8 + $0xf8] sm:$0xf]
    %v2475 = vld [vmem:[#allocation8 + $0xfc] sm:$0xf]
    %v2476 = vld [vmem:[#allocation8 + $0x100] sm:$0xf]
    %v2477 = vld [vmem:[#allocation8 + $0x104] sm:$0xf]
    %v2478 = vld [vmem:[#allocation8 + $0x108] sm:$0xf]
    %v2479 = vld [vmem:[#allocation8 + $0x10c] sm:$0xf]
    %v2480 = vld [vmem:[#allocation8 + $0x110] sm:$0xf]
    %v2481 = vld [vmem:[#allocation8 + $0x114] sm:$0xf]
    %v2482 = vld [vmem:[#allocation8 + $0x118] sm:$0xf]
    %v2483 = vld [vmem:[#allocation8 + $0x11c] sm:$0xf]
    %v2484 = vld [vmem:[#allocation8 + $0x120] sm:$0xf]
    %v2485 = vld [vmem:[#allocation8 + $0x124] sm:$0xf]
    %v2486 = vld [vmem:[#allocation8 + $0x128] sm:$0xf]
    %v2487 = vld [vmem:[#allocation8 + $0x12c] sm:$0xf]
    %v2488 = vld [vmem:[#allocation8 + $0x130] sm:$0xf]
    %v2489 = vld [vmem:[#allocation8 + $0x134] sm:$0xf]
    %v2490 = vld [vmem:[#allocation8 + $0x138] sm:$0xf]
    %v2491 = vld [vmem:[#allocation8 + $0x13c] sm:$0xf]
    %v2492 = vld [vmem:[#allocation8 + $0x140] sm:$0xf]
    %v2493 = vld [vmem:[#allocation8 + $0x144] sm:$0xf]
    %v2494 = vld [vmem:[#allocation8 + $0x148] sm:$0xf]
    %v2495 = vld [vmem:[#allocation8 + $0x14c] sm:$0xf]
    %v2496 = vld [vmem:[#allocation8 + $0x150] sm:$0xf]
    %v2497 = vld [vmem:[#allocation8 + $0x154] sm:$0xf]
    %v2498 = vld [vmem:[#allocation8 + $0x158] sm:$0xf]
    %v2499 = vld [vmem:[#allocation8 + $0x15c] sm:$0xf]
    %v2500 = vld [vmem:[#allocation8 + $0x160] sm:$0xf]
    %v2501 = vld [vmem:[#allocation8 + $0x164] sm:$0xf]
    %v2502 = vld [vmem:[#allocation8 + $0x168] sm:$0xf]
    %v2503 = vld [vmem:[#allocation8 + $0x16c] sm:$0xf]
    %v2504 = vld [vmem:[#allocation8 + $0x170] sm:$0xf]
    %v2505 = vld [vmem:[#allocation8 + $0x174] sm:$0xf]
    %v2506 = vld [vmem:[#allocation8 + $0x178] sm:$0xf]
    %v2507 = vld [vmem:[#allocation8 + $0x17c] sm:$0xf]
    %v2508 = vld [vmem:[#allocation10] sm:$0x1]
    %v2510 = vperm.slane %v2508, 0
    %v2608 = vunpack.c.l.b16 %v2412
    %v2609 = vunpack.c.l.b16 %v2413
    %v2610 = vunpack.c.l.b16 %v2414
    %v2611 = vunpack.c.l.b16 %v2415
    %v2612 = vunpack.c.l.b16 %v2416
    %v2613 = vunpack.c.l.b16 %v2417
    %v2614 = vunpack.c.l.b16 %v2418
    %v2615 = vunpack.c.l.b16 %v2419
    %v2616 = vunpack.c.l.b16 %v2420
    %v2617 = vunpack.c.l.b16 %v2421
    %v2618 = vunpack.c.l.b16 %v2422
    %v2619 = vunpack.c.l.b16 %v2423
    %v2620 = vunpack.c.l.b16 %v2424
    %v2621 = vunpack.c.l.b16 %v2425
    %v2622 = vunpack.c.l.b16 %v2426
    %v2623 = vunpack.c.l.b16 %v2427
    %v2624 = vunpack.c.l.b16 %v2428
    %v2625 = vunpack.c.l.b16 %v2429
    %v2626 = vunpack.c.l.b16 %v2430
    %v2627 = vunpack.c.l.b16 %v2431
    %v2628 = vunpack.c.l.b16 %v2432
    %v2629 = vunpack.c.l.b16 %v2433
    %v2630 = vunpack.c.l.b16 %v2434
    %v2631 = vunpack.c.l.b16 %v2435
    %v2632 = vunpack.c.l.b16 %v2436
    %v2633 = vunpack.c.l.b16 %v2437
    %v2634 = vunpack.c.l.b16 %v2438
    %v2635 = vunpack.c.l.b16 %v2439
    %v2636 = vunpack.c.l.b16 %v2440
    %v2637 = vunpack.c.l.b16 %v2441
    %v2638 = vunpack.c.l.b16 %v2442
    %v2639 = vunpack.c.l.b16 %v2443
    %v2640 = vunpack.c.l.b16 %v2444
    %v2641 = vunpack.c.l.b16 %v2445
    %v2642 = vunpack.c.l.b16 %v2446
    %v2643 = vunpack.c.l.b16 %v2447
    %v2644 = vunpack.c.l.b16 %v2448
    %v2645 = vunpack.c.l.b16 %v2449
    %v2646 = vunpack.c.l.b16 %v2450
    %v2647 = vunpack.c.l.b16 %v2451
    %v2648 = vunpack.c.l.b16 %v2452
    %v2649 = vunpack.c.l.b16 %v2453
    %v2650 = vunpack.c.l.b16 %v2454
    %v2651 = vunpack.c.l.b16 %v2455
    %v2652 = vunpack.c.l.b16 %v2456
    %v2653 = vunpack.c.l.b16 %v2457
    %v2654 = vunpack.c.l.b16 %v2458
    %v2655 = vunpack.c.l.b16 %v2459
    %v2656 = vunpack.c.l.b16 %v2460
    %v2657 = vunpack.c.l.b16 %v2461
    %v2658 = vunpack.c.l.b16 %v2462
    %v2659 = vunpack.c.l.b16 %v2463
    %v2660 = vunpack.c.l.b16 %v2464
    %v2661 = vunpack.c.l.b16 %v2465
    %v2662 = vunpack.c.l.b16 %v2466
    %v2663 = vunpack.c.l.b16 %v2467
    %v2664 = vunpack.c.l.b16 %v2468
    %v2665 = vunpack.c.l.b16 %v2469
    %v2666 = vunpack.c.l.b16 %v2470
    %v2667 = vunpack.c.l.b16 %v2471
    %v2668 = vunpack.c.l.b16 %v2472
    %v2669 = vunpack.c.l.b16 %v2473
    %v2670 = vunpack.c.l.b16 %v2474
    %v2671 = vunpack.c.l.b16 %v2475
    %v2672 = vunpack.c.l.b16 %v2476
    %v2673 = vunpack.c.l.b16 %v2477
    %v2674 = vunpack.c.l.b16 %v2478
    %v2675 = vunpack.c.l.b16 %v2479
    %v2676 = vunpack.c.l.b16 %v2480
    %v2677 = vunpack.c.l.b16 %v2481
    %v2678 = vunpack.c.l.b16 %v2482
    %v2679 = vunpack.c.l.b16 %v2483
    %v2680 = vunpack.c.l.b16 %v2484
    %v2681 = vunpack.c.l.b16 %v2485
    %v2682 = vunpack.c.l.b16 %v2486
    %v2683 = vunpack.c.l.b16 %v2487
    %v2684 = vunpack.c.l.b16 %v2488
    %v2685 = vunpack.c.l.b16 %v2489
    %v2686 = vunpack.c.l.b16 %v2490
    %v2687 = vunpack.c.l.b16 %v2491
    %v2688 = vunpack.c.l.b16 %v2492
    %v2689 = vunpack.c.l.b16 %v2493
    %v2690 = vunpack.c.l.b16 %v2494
    %v2691 = vunpack.c.l.b16 %v2495
    %v2692 = vunpack.c.l.b16 %v2496
    %v2693 = vunpack.c.l.b16 %v2497
    %v2694 = vunpack.c.l.b16 %v2498
    %v2695 = vunpack.c.l.b16 %v2499
    %v2696 = vunpack.c.l.b16 %v2500
    %v2697 = vunpack.c.l.b16 %v2501
    %v2698 = vunpack.c.l.b16 %v2502
    %v2699 = vunpack.c.l.b16 %v2503
    %v2700 = vunpack.c.l.b16 %v2504
    %v2701 = vunpack.c.l.b16 %v2505
    %v2702 = vunpack.c.l.b16 %v2506
    %v2703 = vunpack.c.l.b16 %v2507
    %v2704 = vpack.c.b16 %v2609, %v2608
    %v2705 = vpack.c.b16 %v2611, %v2610
    %v2706 = vpack.c.b16 %v2613, %v2612
    %v2707 = vpack.c.b16 %v2615, %v2614
    %v2708 = vpack.c.b16 %v2617, %v2616
    %v2709 = vpack.c.b16 %v2619, %v2618
    %v2710 = vpack.c.b16 %v2621, %v2620
    %v2711 = vpack.c.b16 %v2623, %v2622
    %v2712 = vpack.c.b16 %v2625, %v2624
    %v2713 = vpack.c.b16 %v2627, %v2626
    %v2714 = vpack.c.b16 %v2629, %v2628
    %v2715 = vpack.c.b16 %v2631, %v2630
    %v2716 = vpack.c.b16 %v2633, %v2632
    %v2717 = vpack.c.b16 %v2635, %v2634
    %v2718 = vpack.c.b16 %v2637, %v2636
    %v2719 = vpack.c.b16 %v2639, %v2638
    %v2720 = vpack.c.b16 %v2641, %v2640
    %v2721 = vpack.c.b16 %v2643, %v2642
    %v2722 = vpack.c.b16 %v2645, %v2644
    %v2723 = vpack.c.b16 %v2647, %v2646
    %v2724 = vpack.c.b16 %v2649, %v2648
    %v2725 = vpack.c.b16 %v2651, %v2650
    %v2726 = vpack.c.b16 %v2653, %v2652
    %v2727 = vpack.c.b16 %v2655, %v2654
    %v2728 = vpack.c.b16 %v2657, %v2656
    %v2729 = vpack.c.b16 %v2659, %v2658
    %v2730 = vpack.c.b16 %v2661, %v2660
    %v2731 = vpack.c.b16 %v2663, %v2662
    %v2732 = vpack.c.b16 %v2665, %v2664
    %v2733 = vpack.c.b16 %v2667, %v2666
    %v2734 = vpack.c.b16 %v2669, %v2668
    %v2735 = vpack.c.b16 %v2671, %v2670
    %v2736 = vpack.c.b16 %v2673, %v2672
    %v2737 = vpack.c.b16 %v2675, %v2674
    %v2738 = vpack.c.b16 %v2677, %v2676
    %v2739 = vpack.c.b16 %v2679, %v2678
    %v2740 = vpack.c.b16 %v2681, %v2680
    %v2741 = vpack.c.b16 %v2683, %v2682
    %v2742 = vpack.c.b16 %v2685, %v2684
    %v2743 = vpack.c.b16 %v2687, %v2686
    %v2744 = vpack.c.b16 %v2689, %v2688
    %v2745 = vpack.c.b16 %v2691, %v2690
    %v2746 = vpack.c.b16 %v2693, %v2692
    %v2747 = vpack.c.b16 %v2695, %v2694
    %v2748 = vpack.c.b16 %v2697, %v2696
    %v2749 = vpack.c.b16 %v2699, %v2698
    %v2750 = vpack.c.b16 %v2701, %v2700
    %v2751 = vpack.c.b16 %v2703, %v2702
    %2800 = vmatpush.bf16.msra.mxu0 %v2711
    %2801 = vmatpush.bf16.msra.mxu0 %v2710
    %2802 = vmatpush.bf16.msra.mxu0 %v2709
    %2803 = vmatpush.bf16.msra.mxu0 %v2708
    %2804 = vmatpush.bf16.msra.mxu0 %v2707
    %2805 = vmatpush.bf16.msra.mxu0 %v2706
    %2806 = vmatpush.bf16.msra.mxu0 %v2705
    %2807 = vmatpush.bf16.msra.mxu0 %v2704
    %2808 = vmatmul.bf16.gmra.mxu0 %v2406
    %v2809 = vpop.f32.mrf.mxu0
    %v2810 = vadd.f32 %v2510, %v2809
    %v2811 = vpop.f32.mrf.mxu0
    %v2812 = vadd.f32 %v2510, %v2811
    %2813 = vdwg.mxu0
    %2814 = vmatpush.bf16.msra.mxu0 %v2719
    %2815 = vmatpush.bf16.msra.mxu0 %v2718
    %2816 = vmatpush.bf16.msra.mxu0 %v2717
    %2817 = vmatpush.bf16.msra.mxu0 %v2716
    %2818 = vmatpush.bf16.msra.mxu0 %v2715
    %2819 = vmatpush.bf16.msra.mxu0 %v2714
    %2820 = vmatpush.bf16.msra.mxu0 %v2713
    %2821 = vmatpush.bf16.msra.mxu0 %v2712
    %2822 = vmatmul.bf16.gmra.mxu0 %v2407
    %v2823 = vpop.f32.mrf.mxu0
    %v2824 = vadd.f32 %v2810, %v2823
    %v2825 = vpop.f32.mrf.mxu0
    %v2826 = vadd.f32 %v2812, %v2825
    %2827 = vdwg.mxu0
    %2828 = vmatpush.bf16.msra.mxu0 %v2727
    %2829 = vmatpush.bf16.msra.mxu0 %v2726
    %2830 = vmatpush.bf16.msra.mxu0 %v2725
    %2831 = vmatpush.bf16.msra.mxu0 %v2724
    %2832 = vmatpush.bf16.msra.mxu0 %v2723
    %2833 = vmatpush.bf16.msra.mxu0 %v2722
    %2834 = vmatpush.bf16.msra.mxu0 %v2721
    %2835 = vmatpush.bf16.msra.mxu0 %v2720
    %2836 = vmatmul.bf16.gmra.mxu0 %v2408
    %v2837 = vpop.f32.mrf.mxu0
    %v2838 = vadd.f32 %v2824, %v2837
    %v2839 = vpop.f32.mrf.mxu0
    %v2840 = vadd.f32 %v2826, %v2839
    %2841 = vdwg.mxu0
    %2842 = vmatpush.bf16.msra.mxu0 %v2735
    %2843 = vmatpush.bf16.msra.mxu0 %v2734
    %2844 = vmatpush.bf16.msra.mxu0 %v2733
    %2845 = vmatpush.bf16.msra.mxu0 %v2732
    %2846 = vmatpush.bf16.msra.mxu0 %v2731
    %2847 = vmatpush.bf16.msra.mxu0 %v2730
    %2848 = vmatpush.bf16.msra.mxu0 %v2729
    %2849 = vmatpush.bf16.msra.mxu0 %v2728
    %2850 = vmatmul.bf16.gmra.mxu0 %v2409
    %v2851 = vpop.f32.mrf.mxu0
    %v2852 = vadd.f32 %v2838, %v2851
    %v2853 = vpop.f32.mrf.mxu0
    %v2854 = vadd.f32 %v2840, %v2853
    %2855 = vdwg.mxu0
    %2856 = vmatpush.bf16.msra.mxu0 %v2743
    %2857 = vmatpush.bf16.msra.mxu0 %v2742
    %2858 = vmatpush.bf16.msra.mxu0 %v2741
    %2859 = vmatpush.bf16.msra.mxu0 %v2740
    %2860 = vmatpush.bf16.msra.mxu0 %v2739
    %2861 = vmatpush.bf16.msra.mxu0 %v2738
    %2862 = vmatpush.bf16.msra.mxu0 %v2737
    %2863 = vmatpush.bf16.msra.mxu0 %v2736
    %2864 = vmatmul.bf16.gmra.mxu0 %v2410
    %v2865 = vpop.f32.mrf.mxu0
    %v2866 = vadd.f32 %v2852, %v2865
    %v2867 = vpop.f32.mrf.mxu0
    %v2868 = vadd.f32 %v2854, %v2867
    %2869 = vdwg.mxu0
    %2870 = vmatpush.bf16.msra.mxu0 %v2751
    %2871 = vmatpush.bf16.msra.mxu0 %v2750
    %2872 = vmatpush.bf16.msra.mxu0 %v2749
    %2873 = vmatpush.bf16.msra.mxu0 %v2748
    %2874 = vmatpush.bf16.msra.mxu0 %v2747
    %2875 = vmatpush.bf16.msra.mxu0 %v2746
    %2876 = vmatpush.bf16.msra.mxu0 %v2745
    %2877 = vmatpush.bf16.msra.mxu0 %v2744
    %2878 = vmatmul.bf16.gmra.mxu0 %v2411
    %v2879 = vpop.f32.mrf.mxu0
    %v2880 = vadd.f32 %v2866, %v2879
    %v2881 = vpop.f32.mrf.mxu0
    %v2882 = vadd.f32 %v2868, %v2881
    %2883 = vdwg.mxu0
    %v2884 = vmax.f32 %v2880, 0.0
    %v2885 = vmax.f32 %v2882, 0.0
    %v2886 = vpack.c.bf16 %v2885, %v2884
    %v2887 = vld [vmem:[#allocation11] sm:$0xf]
    %v2888 = vld [vmem:[#allocation11 + $0x4] sm:$0xf]
    %v2889 = vld [vmem:[#allocation11 + $0x8] sm:$0xf]
    %v2890 = vld [vmem:[#allocation11 + $0xc] sm:$0xf]
    %v2891 = vld [vmem:[#allocation11 + $0x10] sm:$0xf]
    %v2892 = vld [vmem:[#allocation11 + $0x14] sm:$0xf]
    %v2893 = vld [vmem:[#allocation11 + $0x18] sm:$0xf]
    %v2894 = vld [vmem:[#allocation11 + $0x1c] sm:$0xf]
    %v2895 = vld [vmem:[#allocation11 + $0x20] sm:$0xf]
    %v2896 = vld [vmem:[#allocation11 + $0x24] sm:$0xf]
    %v2897 = vld [vmem:[#allocation11 + $0x28] sm:$0xf]
    %v2898 = vld [vmem:[#allocation11 + $0x2c] sm:$0xf]
    %v2899 = vld [vmem:[#allocation11 + $0x30] sm:$0xf]
    %v2900 = vld [vmem:[#allocation11 + $0x34] sm:$0xf]
    %v2901 = vld [vmem:[#allocation11 + $0x38] sm:$0xf]
    %v2902 = vld [vmem:[#allocation11 + $0x3c] sm:$0xf]
    %v2903 = vld [vmem:[#allocation13] sm:$0x1]
    %v2905 = vperm.slane %v2903, 0
    %v2923 = vunpack.c.l.b16 %v2887
    %v2924 = vunpack.c.l.b16 %v2888
    %v2925 = vunpack.c.l.b16 %v2889
    %v2926 = vunpack.c.l.b16 %v2890
    %v2927 = vunpack.c.l.b16 %v2891
    %v2928 = vunpack.c.l.b16 %v2892
    %v2929 = vunpack.c.l.b16 %v2893
    %v2930 = vunpack.c.l.b16 %v2894
    %v2931 = vunpack.c.l.b16 %v2895
    %v2932 = vunpack.c.l.b16 %v2896
    %v2933 = vunpack.c.l.b16 %v2897
    %v2934 = vunpack.c.l.b16 %v2898
    %v2935 = vunpack.c.l.b16 %v2899
    %v2936 = vunpack.c.l.b16 %v2900
    %v2937 = vunpack.c.l.b16 %v2901
    %v2938 = vunpack.c.l.b16 %v2902
    %v2939 = vpack.c.b16 %v2924, %v2923
    %v2940 = vpack.c.b16 %v2926, %v2925
    %v2941 = vpack.c.b16 %v2928, %v2927
    %v2942 = vpack.c.b16 %v2930, %v2929
    %v2943 = vpack.c.b16 %v2932, %v2931
    %v2944 = vpack.c.b16 %v2934, %v2933
    %v2945 = vpack.c.b16 %v2936, %v2935
    %v2946 = vpack.c.b16 %v2938, %v2937
    %2955 = vmatpush.bf16.msra.mxu0 %v2946
    %2956 = vmatpush.bf16.msra.mxu0 %v2945
    %2957 = vmatpush.bf16.msra.mxu0 %v2944
    %2958 = vmatpush.bf16.msra.mxu0 %v2943
    %2959 = vmatpush.bf16.msra.mxu0 %v2942
    %2960 = vmatpush.bf16.msra.mxu0 %v2941
    %2961 = vmatpush.bf16.msra.mxu0 %v2940
    %2962 = vmatpush.bf16.msra.mxu0 %v2939
    %2963 = vmatmul.bf16.gmra.mxu0 %v2886
    %v2964 = vpop.f32.mrf.mxu0
    %v2965 = vadd.f32 %v2905, %v2964
    %v2966 = vpop.f32.mrf.mxu0
    %v2967 = vadd.f32 %v2905, %v2966
    %2968 = vdwg.mxu0
    %v2969 = vmax.f32 %v2965, 0.0
    %v2970 = vmax.f32 %v2967, 0.0
    %v2971 = vpack.c.bf16 %v2969, %v2969
    %v2972 = vpack.c.bf16 %v2970, %v2970
    %2973 = vst [vmem:[#allocation14] sm:$0xf] %v2971
    %2974 = vst [vmem:[#allocation14 + $0x4] sm:$0xf] %v2972
    // Predicated region
    $region58: #{tpu_custom_call.1} parent=1 // pred_check
      _
    $region59: #{tpu_custom_call.1} parent=1 // pred_check_branch
      %2976 = sbr.rel (0) target = $region61
    $region60: #{tpu_custom_call.1} parent=1 // pred_region
      %2978 = vsyncadd [#allocation4], 64
      %s2979 = sshll.u32 [#allocation14], 4
      %s2980 = int_to_ptr.vmem [resolvable:$true] %s2979
      %s2981 = sshll.u32 %s7, 4
      %s2982 = int_to_ptr.hbm [resolvable:$true] %s2981
      %2987 = dma.vmem_to_hbm [thread:$0]  %s2980, 64, %s2982, [#allocation4], 64, 64, 4
    $region61: #{tpu_custom_call.1} parent=1 // pred_fallthru
      _
    // Predicated region
    $region62: #{tpu_custom_call.1} parent=1 // pred_check
      _
    $region63: #{tpu_custom_call.1} parent=1 // pred_check_branch
      %2989 = sbr.rel (0) target = $region65
    $region64: #{tpu_custom_call.1} parent=1 // pred_region
      %2991 = dma.done [#allocation4], 128
    $region65: #{tpu_custom_call.1} parent=1 // pred_fallthru
      _
    %2992 = vsyncpa [#allocation3], 1
    %2993 = vsyncpa [#allocation6], 1
    %2994 = vsyncpa [#allocation9], 1
    %2995 = vsyncpa [#allocation12], 1
    %2996 = vsyncpa [#allocation4], 1

</llo_original>
